<compile_context>
chip_gen: v7x
topology: tpu7x:2x2x1
jax: 0.10.0
libtpu: 0.0.40
codegen_flags: <defaults>
</compile_context>

<pallas_src>
import functools

import jax
import jax.numpy as jnp
from jax.experimental import pallas as pl
from jax.experimental.pallas import tpu as pltpu

_NEG_SLOPE = 0.1


def _leaky_relu(x):
    return jnp.where(x > 0, x, _NEG_SLOPE * x)


def _round_up(x, m):
    return ((x + m - 1) // m) * m


def _fused_conv_kernel(x_ref, w_ref, b_ref, o_ref, *, kh, kw, w_padded,
                       win_len):
    """stride == 1 path: fused im2col + GEMM + bias + LeakyReLU, one image/step.

    x_ref: (1, C_in, L)           flattened zero-padded image, tail-padded so
                                  every tap window of length win_len fits.
    w_ref: (KH*KW, C_out, C_in)   per-tap weight matrices.
    b_ref: (C_out, 1)
    o_ref: (1, C_out, win_len)    "wide" output; wrap-around / tail columns
                                  are junk, sliced off outside.
    """
    c_out = o_ref.shape[1]
    acc = jnp.zeros((c_out, win_len), jnp.float32)
    for i in range(kh):
        for j in range(kw):
            tap = i * kw + j
            # Shifted window of the flattened image: (C_in, win_len).
            xs = x_ref[0, :, pl.ds(i * w_padded + j, win_len)]
            wij = w_ref[tap]                                   # (C_out, C_in)
            acc = acc + jnp.dot(wij, xs, preferred_element_type=jnp.float32)
    acc = acc + b_ref[...]                                     # (C_out, 1) bcast
    o_ref[0] = _leaky_relu(acc).astype(o_ref.dtype)


def _gemm_conv_kernel(p_ref, w_ref, b_ref, o_ref):
    """General path: (C_out, K) @ (K, TM) + bias + LeakyReLU (lane-dense out)."""
    acc = jnp.dot(w_ref[...], p_ref[0], preferred_element_type=jnp.float32)
    acc = acc + b_ref[...]
    o_ref[0] = _leaky_relu(acc).astype(o_ref.dtype)


@functools.partial(jax.jit, static_argnames=("stride", "padding"))
def conv_block_forward(x, weight, bias, *, stride, padding):
    """ConvBlock.forward: LeakyReLU(Conv2d(x), 0.1).

    x:      (N, C_in, H, W)        float32, NCHW (PyTorch convention)
    weight: (C_out, C_in, KH, KW)  float32 (PyTorch Conv2d layout)
    bias:   (C_out,)               float32
    returns (N, C_out, H_out, W_out) float32, NCHW
    """
    n, c_in, h, w = x.shape
    c_out, _, kh, kw = weight.shape
    h_out = (h + 2 * padding - kh) // stride + 1
    w_out = (w + 2 * padding - kw) // stride + 1
    k = c_in * kh * kw

    b_mat = bias.reshape(c_out, 1).astype(jnp.float32)

    xp = jnp.pad(x.astype(jnp.float32),
                 ((0, 0), (0, 0), (padding, padding), (padding, padding)))
    h_pad, w_padded = h + 2 * padding, w + 2 * padding

    flops = 2 * n * c_out * k * h_out * w_out

    # ------------------- fused fast path (stride == 1) -------------------
    hw_pad = h_pad * w_padded
    hw_wide = h_out * w_padded                      # meaningful wide width
    win_len = _round_up(hw_wide, 128)               # lane-dense output width
    max_off = (kh - 1) * w_padded + (kw - 1)        # largest tap start
    x_flat_len = max_off + win_len                  # every window in bounds
    vmem_est = 4 * (2 * c_in * x_flat_len + 3 * c_out * win_len)
    if stride == 1 and vmem_est < (24 << 20):
        x_flat = xp.reshape(n, c_in, hw_pad)
        x_flat = jnp.pad(x_flat, ((0, 0), (0, 0), (0, x_flat_len - hw_pad)))
        # Per-tap weight matrices: (KH*KW, C_out, C_in).
        w_taps = weight.transpose(2, 3, 0, 1).reshape(kh * kw, c_out, c_in)
        w_taps = w_taps.astype(jnp.float32)

        kern = functools.partial(_fused_conv_kernel, kh=kh, kw=kw,
                                 w_padded=w_padded, win_len=win_len)
        out_wide = pl.pallas_call(
            kern,
            out_shape=jax.ShapeDtypeStruct((n, c_out, win_len), jnp.float32),
            grid_spec=pltpu.PrefetchScalarGridSpec(
                num_scalar_prefetch=0,
                grid=(n,),
                in_specs=[
                    pl.BlockSpec((1, c_in, x_flat_len), lambda i: (i, 0, 0)),
                    pl.BlockSpec((kh * kw, c_out, c_in),
                                 lambda i: (0, 0, 0)),         # resident
                    pl.BlockSpec((c_out, 1), lambda i: (0, 0)),  # resident
                ],
                out_specs=pl.BlockSpec((1, c_out, win_len),
                                       lambda i: (i, 0, 0)),
            ),
            compiler_params=pltpu.CompilerParams(
                dimension_semantics=("parallel",)),
            cost_estimate=pl.CostEstimate(
                flops=flops, transcendentals=0,
                bytes_accessed=4 * (n * c_in * x_flat_len + c_out * k + c_out
                                    + n * c_out * win_len)),
        )(x_flat, w_taps, b_mat)
        # Drop tail / wrap-around columns; already NCHW-ordered, no transpose.
        out = out_wide[:, :, :hw_wide].reshape(n, c_out, h_out, w_padded)
        return out[:, :, :, :w_out]

    # --------------------------- general path ---------------------------
    # TODO(synk): fuse im2col for strided convs too (needs two-level strided
    # windows); here XLA builds the patches, but transposed as (N, K, P) so
    # the kernel GEMM output stays lane-dense.
    cols = []
    for i in range(kh):
        for j in range(kw):
            cols.append(xp[:, :, i:i + stride * h_out:stride,
                           j:j + stride * w_out:stride])
    patches = jnp.stack(cols, axis=1)               # (N, KH*KW, C_in, Ho, Wo)
    p = h_out * w_out
    patches = patches.reshape(n, k, p)

    # (C_out, K) with K tap-major / channel-minor (matches patches ordering).
    w_mat = weight.transpose(0, 2, 3, 1).reshape(c_out, k).astype(jnp.float32)

    tm = min(_round_up(p, 128), 2048)
    p_pad = _round_up(p, tm)
    if p_pad != p:
        patches = jnp.pad(patches, ((0, 0), (0, 0), (0, p_pad - p)))

    out_flat = pl.pallas_call(
        _gemm_conv_kernel,
        out_shape=jax.ShapeDtypeStruct((n, c_out, p_pad), jnp.float32),
        grid_spec=pltpu.PrefetchScalarGridSpec(
            num_scalar_prefetch=0,
            grid=(n, p_pad // tm),
            in_specs=[
                pl.BlockSpec((1, k, tm), lambda i, j: (i, 0, j)),
                pl.BlockSpec((c_out, k), lambda i, j: (0, 0)),    # resident
                pl.BlockSpec((c_out, 1), lambda i, j: (0, 0)),    # resident
            ],
            out_specs=pl.BlockSpec((1, c_out, tm), lambda i, j: (i, 0, j)),
        ),
        compiler_params=pltpu.CompilerParams(
            dimension_semantics=("parallel", "parallel")),
        cost_estimate=pl.CostEstimate(
            flops=flops, transcendentals=0,
            bytes_accessed=4 * (n * k * p_pad + c_out * k + c_out
                                + n * c_out * p_pad)),
    )(patches, w_mat, b_mat)
    out = out_flat[:, :, :p].reshape(n, c_out, h_out, w_out)
    return out


def _reference(x, weight, bias, stride, padding):
    y = jax.lax.conv_general_dilated(
        x, weight,
        window_strides=(stride, stride),
        padding=[(padding, padding), (padding, padding)],
        dimension_numbers=("NCHW", "OIHW", "NCHW"))
    y = y + bias.reshape(1, -1, 1, 1)
    return jnp.where(y > 0, y, _NEG_SLOPE * y)


if __name__ == "__main__":
    # ConvBlock(c_in=4, c_out=8, kernel_size=3, stride=1, padding=1)
    c_in, c_out, ksize, stride, padding = 4, 8, 3, 1, 1
    n, h, w = 2, 16, 16

    key = jax.random.PRNGKey(0)
    kx, kw_, kb = jax.random.split(key, 3)

    x = jax.random.normal(kx, (n, c_in, h, w), dtype=jnp.float32)
    fan_in = c_in * ksize * ksize
    bound = 1.0 / (fan_in ** 0.5)
    weight = jax.random.uniform(kw_, (c_out, c_in, ksize, ksize),
                                minval=-bound, maxval=bound,
                                dtype=jnp.float32)
    bias = jax.random.uniform(kb, (c_out,), minval=-bound, maxval=bound,
                              dtype=jnp.float32)

    # Fused stride-1 fast path (matches the module configuration).
    out = conv_block_forward(x, weight, bias, stride=stride, padding=padding)
    out = jax.block_until_ready(out)
    ref = _reference(x, weight, bias, stride, padding)
    assert out.shape == ref.shape, (out.shape, ref.shape)
    assert jnp.allclose(out, ref, atol=1e-5, rtol=1e-5), "fused path mismatch"

    # General (strided) path coverage.
    out2 = conv_block_forward(x, weight, bias, stride=2, padding=padding)
    out2 = jax.block_until_ready(out2)
    ref2 = _reference(x, weight, bias, 2, padding)
    assert out2.shape == ref2.shape, (out2.shape, ref2.shape)
    assert jnp.allclose(out2, ref2, atol=1e-5, rtol=1e-5), "gemm path mismatch"

    print("KERNEL_OK")
</pallas_src>

<mosaic_0001>
module attributes {stable_mosaic.version = 11 : i64} {
  func.func @_fused_conv_kernel(%arg0: i32, %arg1: memref<1x4x422xf32, #tpu.memory_space<vmem>>, %arg2: memref<9x8x4xf32, #tpu.memory_space<vmem>>, %arg3: memref<8x1xf32, #tpu.memory_space<vmem>>, %arg4: memref<1x8x384xf32, #tpu.memory_space<vmem>>) attributes {dimension_semantics = [#tpu.dimension_semantics<parallel>], iteration_bounds = array<i64: 2>, scalar_prefetch = 0 : i64, scratch_operands = 0 : i64, tpu.core_type = #tpu.core_type<tc>, window_params = [{transform_indices = @transform_0, window_bounds = array<i64: 1, 4, 422>}, {pipeline_mode = #tpu.pipeline_mode<synchronous>, transform_indices = @transform_1, window_bounds = array<i64: 9, 8, 4>}, {pipeline_mode = #tpu.pipeline_mode<synchronous>, transform_indices = @transform_2, window_bounds = array<i64: 8, 1>}, {transform_indices = @transform_3, window_bounds = array<i64: 1, 8, 384>}]} {
    %cst = arith.constant 0.000000e+00 : f32
    %0 = vector.broadcast %cst : f32 to vector<8x384xf32>
    %c0 = arith.constant 0 : index
    %c0_0 = arith.constant 0 : index
    %c0_1 = arith.constant 0 : index
    %1 = vector.load %arg1[%c0, %c0_0, %c0_1] : memref<1x4x422xf32, #tpu.memory_space<vmem>>, vector<1x4x384xf32>
    %2 = vector.shape_cast %1 : vector<1x4x384xf32> to vector<4x384xf32>
    %c0_2 = arith.constant 0 : index
    %c0_3 = arith.constant 0 : index
    %c0_4 = arith.constant 0 : index
    %3 = vector.load %arg2[%c0_2, %c0_3, %c0_4] : memref<9x8x4xf32, #tpu.memory_space<vmem>>, vector<1x8x4xf32>
    %4 = vector.shape_cast %3 : vector<1x8x4xf32> to vector<8x4xf32>
    %cst_5 = arith.constant dense<0.000000e+00> : vector<8x384xf32>
    %5 = tpu.matmul %4, %2, %cst_5 {dimension_numbers = #tpu.dot_dimension_numbers<[1], [0], [0], [1], [0, 0, 1, 1], [], []>} : vector<8x4xf32>, vector<4x384xf32>, vector<8x384xf32> -> vector<8x384xf32>
    %6 = arith.addf %0, %5 : vector<8x384xf32>
    %c0_6 = arith.constant 0 : index
    %c0_7 = arith.constant 0 : index
    %c1 = arith.constant 1 : index
    %7 = vector.load %arg1[%c0_6, %c0_7, %c1] : memref<1x4x422xf32, #tpu.memory_space<vmem>>, vector<1x4x384xf32>
    %8 = vector.shape_cast %7 : vector<1x4x384xf32> to vector<4x384xf32>
    %c1_8 = arith.constant 1 : index
    %c0_9 = arith.constant 0 : index
    %c0_10 = arith.constant 0 : index
    %9 = vector.load %arg2[%c1_8, %c0_9, %c0_10] : memref<9x8x4xf32, #tpu.memory_space<vmem>>, vector<1x8x4xf32>
    %10 = vector.shape_cast %9 : vector<1x8x4xf32> to vector<8x4xf32>
    %cst_11 = arith.constant dense<0.000000e+00> : vector<8x384xf32>
    %11 = tpu.matmul %10, %8, %cst_11 {dimension_numbers = #tpu.dot_dimension_numbers<[1], [0], [0], [1], [0, 0, 1, 1], [], []>} : vector<8x4xf32>, vector<4x384xf32>, vector<8x384xf32> -> vector<8x384xf32>
    %12 = arith.addf %6, %11 : vector<8x384xf32>
    %c0_12 = arith.constant 0 : index
    %c0_13 = arith.constant 0 : index
    %c2 = arith.constant 2 : index
    %13 = vector.load %arg1[%c0_12, %c0_13, %c2] : memref<1x4x422xf32, #tpu.memory_space<vmem>>, vector<1x4x384xf32>
    %14 = vector.shape_cast %13 : vector<1x4x384xf32> to vector<4x384xf32>
    %c2_14 = arith.constant 2 : index
    %c0_15 = arith.constant 0 : index
    %c0_16 = arith.constant 0 : index
    %15 = vector.load %arg2[%c2_14, %c0_15, %c0_16] : memref<9x8x4xf32, #tpu.memory_space<vmem>>, vector<1x8x4xf32>
    %16 = vector.shape_cast %15 : vector<1x8x4xf32> to vector<8x4xf32>
    %cst_17 = arith.constant dense<0.000000e+00> : vector<8x384xf32>
    %17 = tpu.matmul %16, %14, %cst_17 {dimension_numbers = #tpu.dot_dimension_numbers<[1], [0], [0], [1], [0, 0, 1, 1], [], []>} : vector<8x4xf32>, vector<4x384xf32>, vector<8x384xf32> -> vector<8x384xf32>
    %18 = arith.addf %12, %17 : vector<8x384xf32>
    %c0_18 = arith.constant 0 : index
    %c0_19 = arith.constant 0 : index
    %c18 = arith.constant 18 : index
    %19 = vector.load %arg1[%c0_18, %c0_19, %c18] : memref<1x4x422xf32, #tpu.memory_space<vmem>>, vector<1x4x384xf32>
    %20 = vector.shape_cast %19 : vector<1x4x384xf32> to vector<4x384xf32>
    %c3 = arith.constant 3 : index
    %c0_20 = arith.constant 0 : index
    %c0_21 = arith.constant 0 : index
    %21 = vector.load %arg2[%c3, %c0_20, %c0_21] : memref<9x8x4xf32, #tpu.memory_space<vmem>>, vector<1x8x4xf32>
    %22 = vector.shape_cast %21 : vector<1x8x4xf32> to vector<8x4xf32>
    %cst_22 = arith.constant dense<0.000000e+00> : vector<8x384xf32>
    %23 = tpu.matmul %22, %20, %cst_22 {dimension_numbers = #tpu.dot_dimension_numbers<[1], [0], [0], [1], [0, 0, 1, 1], [], []>} : vector<8x4xf32>, vector<4x384xf32>, vector<8x384xf32> -> vector<8x384xf32>
    %24 = arith.addf %18, %23 : vector<8x384xf32>
    %c0_23 = arith.constant 0 : index
    %c0_24 = arith.constant 0 : index
    %c19 = arith.constant 19 : index
    %25 = vector.load %arg1[%c0_23, %c0_24, %c19] : memref<1x4x422xf32, #tpu.memory_space<vmem>>, vector<1x4x384xf32>
    %26 = vector.shape_cast %25 : vector<1x4x384xf32> to vector<4x384xf32>
    %c4 = arith.constant 4 : index
    %c0_25 = arith.constant 0 : index
    %c0_26 = arith.constant 0 : index
    %27 = vector.load %arg2[%c4, %c0_25, %c0_26] : memref<9x8x4xf32, #tpu.memory_space<vmem>>, vector<1x8x4xf32>
    %28 = vector.shape_cast %27 : vector<1x8x4xf32> to vector<8x4xf32>
    %cst_27 = arith.constant dense<0.000000e+00> : vector<8x384xf32>
    %29 = tpu.matmul %28, %26, %cst_27 {dimension_numbers = #tpu.dot_dimension_numbers<[1], [0], [0], [1], [0, 0, 1, 1], [], []>} : vector<8x4xf32>, vector<4x384xf32>, vector<8x384xf32> -> vector<8x384xf32>
    %30 = arith.addf %24, %29 : vector<8x384xf32>
    %c0_28 = arith.constant 0 : index
    %c0_29 = arith.constant 0 : index
    %c20 = arith.constant 20 : index
    %31 = vector.load %arg1[%c0_28, %c0_29, %c20] : memref<1x4x422xf32, #tpu.memory_space<vmem>>, vector<1x4x384xf32>
    %32 = vector.shape_cast %31 : vector<1x4x384xf32> to vector<4x384xf32>
    %c5 = arith.constant 5 : index
    %c0_30 = arith.constant 0 : index
    %c0_31 = arith.constant 0 : index
    %33 = vector.load %arg2[%c5, %c0_30, %c0_31] : memref<9x8x4xf32, #tpu.memory_space<vmem>>, vector<1x8x4xf32>
    %34 = vector.shape_cast %33 : vector<1x8x4xf32> to vector<8x4xf32>
    %cst_32 = arith.constant dense<0.000000e+00> : vector<8x384xf32>
    %35 = tpu.matmul %34, %32, %cst_32 {dimension_numbers = #tpu.dot_dimension_numbers<[1], [0], [0], [1], [0, 0, 1, 1], [], []>} : vector<8x4xf32>, vector<4x384xf32>, vector<8x384xf32> -> vector<8x384xf32>
    %36 = arith.addf %30, %35 : vector<8x384xf32>
    %c0_33 = arith.constant 0 : index
    %c0_34 = arith.constant 0 : index
    %c36 = arith.constant 36 : index
    %37 = vector.load %arg1[%c0_33, %c0_34, %c36] : memref<1x4x422xf32, #tpu.memory_space<vmem>>, vector<1x4x384xf32>
    %38 = vector.shape_cast %37 : vector<1x4x384xf32> to vector<4x384xf32>
    %c6 = arith.constant 6 : index
    %c0_35 = arith.constant 0 : index
    %c0_36 = arith.constant 0 : index
    %39 = vector.load %arg2[%c6, %c0_35, %c0_36] : memref<9x8x4xf32, #tpu.memory_space<vmem>>, vector<1x8x4xf32>
    %40 = vector.shape_cast %39 : vector<1x8x4xf32> to vector<8x4xf32>
    %cst_37 = arith.constant dense<0.000000e+00> : vector<8x384xf32>
    %41 = tpu.matmul %40, %38, %cst_37 {dimension_numbers = #tpu.dot_dimension_numbers<[1], [0], [0], [1], [0, 0, 1, 1], [], []>} : vector<8x4xf32>, vector<4x384xf32>, vector<8x384xf32> -> vector<8x384xf32>
    %42 = arith.addf %36, %41 : vector<8x384xf32>
    %c0_38 = arith.constant 0 : index
    %c0_39 = arith.constant 0 : index
    %c37 = arith.constant 37 : index
    %43 = vector.load %arg1[%c0_38, %c0_39, %c37] : memref<1x4x422xf32, #tpu.memory_space<vmem>>, vector<1x4x384xf32>
    %44 = vector.shape_cast %43 : vector<1x4x384xf32> to vector<4x384xf32>
    %c7 = arith.constant 7 : index
    %c0_40 = arith.constant 0 : index
    %c0_41 = arith.constant 0 : index
    %45 = vector.load %arg2[%c7, %c0_40, %c0_41] : memref<9x8x4xf32, #tpu.memory_space<vmem>>, vector<1x8x4xf32>
    %46 = vector.shape_cast %45 : vector<1x8x4xf32> to vector<8x4xf32>
    %cst_42 = arith.constant dense<0.000000e+00> : vector<8x384xf32>
    %47 = tpu.matmul %46, %44, %cst_42 {dimension_numbers = #tpu.dot_dimension_numbers<[1], [0], [0], [1], [0, 0, 1, 1], [], []>} : vector<8x4xf32>, vector<4x384xf32>, vector<8x384xf32> -> vector<8x384xf32>
    %48 = arith.addf %42, %47 : vector<8x384xf32>
    %c0_43 = arith.constant 0 : index
    %c0_44 = arith.constant 0 : index
    %c38 = arith.constant 38 : index
    %49 = vector.load %arg1[%c0_43, %c0_44, %c38] : memref<1x4x422xf32, #tpu.memory_space<vmem>>, vector<1x4x384xf32>
    %50 = vector.shape_cast %49 : vector<1x4x384xf32> to vector<4x384xf32>
    %c8 = arith.constant 8 : index
    %c0_45 = arith.constant 0 : index
    %c0_46 = arith.constant 0 : index
    %51 = vector.load %arg2[%c8, %c0_45, %c0_46] : memref<9x8x4xf32, #tpu.memory_space<vmem>>, vector<1x8x4xf32>
    %52 = vector.shape_cast %51 : vector<1x8x4xf32> to vector<8x4xf32>
    %cst_47 = arith.constant dense<0.000000e+00> : vector<8x384xf32>
    %53 = tpu.matmul %52, %50, %cst_47 {dimension_numbers = #tpu.dot_dimension_numbers<[1], [0], [0], [1], [0, 0, 1, 1], [], []>} : vector<8x4xf32>, vector<4x384xf32>, vector<8x384xf32> -> vector<8x384xf32>
    %54 = arith.addf %48, %53 : vector<8x384xf32>
    %c0_48 = arith.constant 0 : index
    %c0_49 = arith.constant 0 : index
    %55 = vector.load %arg3[%c0_48, %c0_49] : memref<8x1xf32, #tpu.memory_space<vmem>>, vector<8x1xf32>
    %56 = vector.broadcast %55 : vector<8x1xf32> to vector<8x384xf32>
    %57 = arith.addf %54, %56 : vector<8x384xf32>
    %cst_50 = arith.constant 0.000000e+00 : f32
    %58 = vector.broadcast %cst_50 : f32 to vector<8x384xf32>
    %59 = arith.cmpf ogt, %57, %58 : vector<8x384xf32>
    %cst_51 = arith.constant 1.000000e-01 : f32
    %60 = vector.broadcast %cst_51 : f32 to vector<8x384xf32>
    %61 = arith.mulf %60, %57 : vector<8x384xf32>
    %62 = arith.select %59, %57, %61 : vector<8x384xi1>, vector<8x384xf32>
    %c0_52 = arith.constant 0 : index
    %c0_53 = arith.constant 0 : index
    %c0_54 = arith.constant 0 : index
    %63 = vector.load %arg4[%c0_52, %c0_53, %c0_54] : memref<1x8x384xf32, #tpu.memory_space<vmem>>, vector<1x8x384xf32>
    %64 = vector.shape_cast %63 : vector<1x8x384xf32> to vector<8x384xf32>
    %65 = vector.shape_cast %62 : vector<8x384xf32> to vector<1x8x384xf32>
    tpu.vector_store %arg4[%c0_52, %c0_53, %c0_54], %65 {strides = array<i32>} : memref<1x8x384xf32, #tpu.memory_space<vmem>>, vector<1x8x384xf32>,
    return
  }
  func.func @transform_0(%arg0: i32) -> (i32, i32, i32) {
    %c0_i32 = arith.constant 0 : i32
    %c0_i32_0 = arith.constant 0 : i32
    %c0_i32_1 = arith.constant 0 : i32
    return %arg0, %c0_i32, %c0_i32_0 : i32, i32, i32
  }
  func.func @transform_1(%arg0: i32) -> (i32, i32, i32) {
    %c0_i32 = arith.constant 0 : i32
    %c0_i32_0 = arith.constant 0 : i32
    %c0_i32_1 = arith.constant 0 : i32
    %c0_i32_2 = arith.constant 0 : i32
    return %c0_i32, %c0_i32_0, %c0_i32_1 : i32, i32, i32
  }
  func.func @transform_2(%arg0: i32) -> (i32, i32) {
    %c0_i32 = arith.constant 0 : i32
    %c0_i32_0 = arith.constant 0 : i32
    %c0_i32_1 = arith.constant 0 : i32
    return %c0_i32, %c0_i32_0 : i32, i32
  }
  func.func @transform_3(%arg0: i32) -> (i32, i32, i32) {
    %c0_i32 = arith.constant 0 : i32
    %c0_i32_0 = arith.constant 0 : i32
    %c0_i32_1 = arith.constant 0 : i32
    return %arg0, %c0_i32, %c0_i32_0 : i32, i32, i32
  }
}

</mosaic_0001>

<llo_original>
// kernel: conv_block_forward.1
$region0: #{conv_block_forward.1}
  #allocation0 [shape = 'u32[]', space=smem, size = 0x4, offset = 0x4, fixed_abs, tag = 'smem constant byte address 0x4 - core index']
  #allocation1 [shape = 'u32[144,128]{1,0:T(1,128)}', space=vmem, size = 0x12000, scoped, tag = 'internal scratch']
  %s0 = inlined_call_operand.vmem [shape: f32[2,4,422], index: 0, kind: input, shape index: {}]
  %s1 = inlined_call_operand.vmem [shape: f32[9,8,4], index: 1, kind: input, shape index: {}]
  %s2 = inlined_call_operand.vmem [shape: f32[8,1], index: 2, kind: input, shape index: {}]
  %s3 = inlined_call_operand.vmem [shape: f32[2,8,384], index: 3, kind: output, shape index: {}]
  %s4 = sld [smem:[#allocation0]]
  $region45: #{conv_block_forward.1} parent=0
    _
  %s6 = ssub.s32 1, %s4
  %s7 = scalar_select 0, %s6, %s4
  loop: start=0, step=1, limit=4
  $region2: #{conv_block_forward.1} parent=0 // loop_pre_header
    _
  $region3: #{conv_block_forward.1} parent=0 // loop_header
    %s9 = sphi 0, %s13
    %p10 = scmp.ge.s32.totalorder %s9, 4
    %s19 = sphi 0, %s21
    %s22 = sphi 0, %s19
    %s23 = sphi 0, %s22
    %s39 = sphi 0, %s23
    %s43 = sphi 0, %s43
    %s45 = sphi 0, %s43
    %s46 = sphi 0, %s45
    %s60 = sphi 0, %s46
    %s64 = sphi 0, %s64
    %s66 = sphi 0, %s64
    %s67 = sphi 0, %s66
    %s81 = sphi 0, %s67
    %s87 = sphi 0, %s89
    %s90 = sphi 0, %s87
    %s91 = sphi 0, %s90
    %s107 = sphi 0, %s91
  $region4: #{conv_block_forward.1} parent=0 // loop_header_branch
    %12 = sbr.rel (%p10) target = $region8
  $region5: #{conv_block_forward.1} parent=0 // loop_body
    %s14 = ssub.s32 %s9, 1
    %s15 = ssub.s32 %s9, 2
    %s16 = sadd.s32 %s9, 1
    %s17 = ssub.s32 %s9, %s16
    %p18 = scmp.eq.s32.totalorder %s17, 0
    %s20 = sadd.s32 %s19, 1
    %s21 = scalar_select %p18, %s19, %s20
    %p24 = pneg %p18
    %p25 = scmp.eq.s32.totalorder %s9, 1
    %p26 = por %p24, %p25
    %p27 = scmp.ne.s32.totalorder %s19, %s22
    %p28 = scmp.eq.s32.totalorder %s9, 0
    %p29 = por %p27, %p28
    %p30 = scmp.ne.s32.totalorder %s19, %s22
    %p31 = scmp.eq.s32.totalorder %s14, 1
    %p32 = por %p30, %p31
    %p33 = scmp.ne.s32.totalorder %s22, %s23
    %p34 = scmp.eq.s32.totalorder %s14, 0
    %p35 = por %p33, %p34
    %p36 = scmp.ne.s32.totalorder %s22, %s23
    %p37 = scmp.eq.s32.totalorder %s15, 1
    %p38 = por %p36, %p37
    %p40 = scmp.ne.s32.totalorder %s23, %s39
    %p41 = scmp.eq.s32.totalorder %s15, 0
    %p42 = por %p40, %p41
    %s44 = sadd.s32 %s43, 1
    %p47 = scmp.eq.s32.totalorder %s9, 1
    %p48 = scmp.ne.s32.totalorder %s43, %s45
    %p49 = scmp.eq.s32.totalorder %s9, 0
    %p50 = por %p48, %p49
    %p51 = scmp.ne.s32.totalorder %s43, %s45
    %p52 = scmp.eq.s32.totalorder %s14, 1
    %p53 = por %p51, %p52
    %p54 = scmp.ne.s32.totalorder %s45, %s46
    %p55 = scmp.eq.s32.totalorder %s14, 0
    %p56 = por %p54, %p55
    %p57 = scmp.ne.s32.totalorder %s45, %s46
    %p58 = scmp.eq.s32.totalorder %s15, 1
    %p59 = por %p57, %p58
    %p61 = scmp.ne.s32.totalorder %s46, %s60
    %p62 = scmp.eq.s32.totalorder %s15, 0
    %p63 = por %p61, %p62
    %s65 = sadd.s32 %s64, 1
    %p68 = scmp.eq.s32.totalorder %s9, 1
    %p69 = scmp.ne.s32.totalorder %s64, %s66
    %p70 = scmp.eq.s32.totalorder %s9, 0
    %p71 = por %p69, %p70
    %p72 = scmp.ne.s32.totalorder %s64, %s66
    %p73 = scmp.eq.s32.totalorder %s14, 1
    %p74 = por %p72, %p73
    %p75 = scmp.ne.s32.totalorder %s66, %s67
    %p76 = scmp.eq.s32.totalorder %s14, 0
    %p77 = por %p75, %p76
    %p78 = scmp.ne.s32.totalorder %s66, %s67
    %p79 = scmp.eq.s32.totalorder %s15, 1
    %p80 = por %p78, %p79
    %p82 = scmp.ne.s32.totalorder %s67, %s81
    %p83 = scmp.eq.s32.totalorder %s15, 0
    %p84 = por %p82, %p83
    %s85 = ssub.s32 %s9, %s16
    %p86 = scmp.eq.s32.totalorder %s85, 0
    %s88 = sadd.s32 %s87, 1
    %s89 = scalar_select %p86, %s87, %s88
    %p92 = pneg %p86
    %p93 = scmp.eq.s32.totalorder %s9, 1
    %p94 = por %p92, %p93
    %p95 = scmp.ne.s32.totalorder %s87, %s90
    %p96 = scmp.eq.s32.totalorder %s9, 0
    %p97 = por %p95, %p96
    %p98 = scmp.ne.s32.totalorder %s87, %s90
    %p99 = scmp.eq.s32.totalorder %s14, 1
    %p100 = por %p98, %p99
    %p101 = scmp.ne.s32.totalorder %s90, %s91
    %p102 = scmp.eq.s32.totalorder %s14, 0
    %p103 = por %p101, %p102
    %p104 = scmp.ne.s32.totalorder %s90, %s91
    %p105 = scmp.eq.s32.totalorder %s15, 1
    %p106 = por %p104, %p105
    %p108 = scmp.ne.s32.totalorder %s91, %s107
    %p109 = scmp.eq.s32.totalorder %s15, 0
    %p110 = por %p108, %p109
    %p111 = scmp.le.s32.totalorder 1, %s9
    %p112 = scmp.lt.s32.totalorder %s9, 3
    %p113 = pnand %p111, %p112
    %p114 = pneg %p113
    // Predicated region
    $region9: #{conv_block_forward.1} parent=5 // pred_check
      _
    $region10: #{conv_block_forward.1} parent=5 // pred_check_branch
      %116 = sbr.rel (%p113) target = $region12
    $region11: #{conv_block_forward.1} parent=5 // pred_region
      %s117 = ssub.s32 %s9, 1
      // Predicated region
      $region13: #{conv_block_forward.1} parent=11 // pred_check
        %p118 = pneg %p56
      $region14: #{conv_block_forward.1} parent=11 // pred_check_branch
        %120 = sbr.rel (%p118) target = $region16
      $region15: #{conv_block_forward.1} parent=11 // pred_region
        _
      $region16: #{conv_block_forward.1} parent=11 // pred_fallthru
        _
      // Predicated region
      $region17: #{conv_block_forward.1} parent=11 // pred_check
        %p121 = pneg %p77
      $region18: #{conv_block_forward.1} parent=11 // pred_check_branch
        %123 = sbr.rel (%p121) target = $region20
      $region19: #{conv_block_forward.1} parent=11 // pred_region
        _
      $region20: #{conv_block_forward.1} parent=11 // pred_fallthru
        _
    $region12: #{conv_block_forward.1} parent=5 // pred_fallthru
      _
    %p124 = scmp.lt.s32.totalorder %s9, 2
    // Predicated region
    $region21: #{conv_block_forward.1} parent=5 // pred_check
      %p125 = pneg %p124
    $region22: #{conv_block_forward.1} parent=5 // pred_check_branch
      %127 = sbr.rel (%p125) target = $region24
    $region23: #{conv_block_forward.1} parent=5 // pred_region
      // Predicated region
      $region25: #{conv_block_forward.1} parent=23 // pred_check
        %p128 = pneg %p29
      $region26: #{conv_block_forward.1} parent=23 // pred_check_branch
        %130 = sbr.rel (%p128) target = $region28
      $region27: #{conv_block_forward.1} parent=23 // pred_region
        %p131 = scmp.lt.s32.totalorder %s9, 1
        %s132 = scalar_select %p131, %s9, 1
        %s133 = smul.addr %s132, 4
        %s134 = smul.addr %s133, 4
        %s135 = scalar_lea.vmem %s0, %s134
      $region28: #{conv_block_forward.1} parent=23 // pred_fallthru
        _
    $region24: #{conv_block_forward.1} parent=5 // pred_fallthru
      _
    %p136 = scmp.le.s32.totalorder 1, %s9
    %p137 = scmp.lt.s32.totalorder %s9, 3
    %p138 = pnand %p136, %p137
    %p139 = pneg %p138
    // Predicated region
    $region29: #{conv_block_forward.1} parent=5 // pred_check
      _
    $region30: #{conv_block_forward.1} parent=5 // pred_check_branch
      %141 = sbr.rel (%p138) target = $region32
    $region31: #{conv_block_forward.1} parent=5 // pred_region
      %s142 = ssub.s32 %s9, 1
      %p143 = scmp.lt.s32.totalorder %s14, 1
      %s144 = scalar_select %p143, %s14, 1
      %s145 = smul.addr %s144, 4
      %s146 = smul.addr %s145, 4
      %s147 = scalar_lea.vmem %s0, %s146
      %p148 = pneg %p35
      %p149 = pneg %p32
      %p150 = pneg %p56
      %p151 = pneg %p53
      %p152 = pneg %p77
      %p153 = pneg %p74
      %p154 = pneg %p103
      %p155 = pneg %p100
      %p156 = scmp.lt.s32.totalorder %s14, 1
      %s157 = scalar_select %p156, %s14, 1
      %s158 = smul.addr %s157, 3
      %s159 = smul.addr %s158, 8
      %s160 = scalar_lea.vmem %s3, %s159
      %p161 = scmp.lt.s32.totalorder %s14, 1
      %s162 = scalar_select %p161, %s14, 1
      %s163 = smul.addr %s162, 4
      %s164 = smul.addr %s163, 4
      %s165 = scalar_lea.vmem %s0, %s164
      %p166 = scmp.lt.s32.totalorder %s14, 1
      %s167 = scalar_select %p166, %s14, 1
      %s168 = smul.addr %s167, 3
      %s169 = smul.addr %s168, 8
      %s170 = scalar_lea.vmem %s3, %s169
      %v171 = vld [vmem:[%s165] sm:$0xff]
      %v172 = vld [vmem:[%s165 + $0x8] sm:$0xf]
      %v173 = vld [vmem:[%s1] sm:$0xff]
      %v174 = vld [vmem:[%s165 + $0x8] sm:$0xff]
      %s175 = scalar_lea.vmem %s1, 8
      %v176 = vld [vmem:[%s175] sm:$0xff]
      %v179 = vcombine.high %v171, %v171
      %v180 = vcombine.high %v174, %v174
      %181 = vrot.lane.b32.xlu0 %v171, 127
      %v182 = vpop.permute.xlu0 %181
      %183 = vrot.lane.b32.xlu0 %v179, 127
      %v184 = vpop.permute.xlu0 %183
      %185 = vrot.lane.b32.xlu0 %v174, 127
      %v186 = vpop.permute.xlu0 %185
      %187 = vrot.lane.b32.xlu0 %v180, 127
      %v188 = vpop.permute.xlu0 %187
      %vm189 = vcmask 1039360
      %v190 = vsel %vm189, %v182, %v184
      %v191 = vsel %vm189, %v184, %v186
      %v192 = vsel %vm189, %v186, %v188
      %vm193 = vcmask 31744
      %v195 = vsel %vm193, %v176, 0
      %vm197 = vcmask 1043456
      %v198 = vsel %vm197, %v190, 0
      %v200 = vsel %vm197, %v191, 0
      %v202 = vsel %vm197, %v192, 0
      %204 = vmatprep.subr.mxu0 %v200
      %205 = vmatpush1.msra.mxu0 %v198
      %206 = vmatprep.subr.mxu0 0.0
      %207 = vmatpush1.msra.mxu0 0.0
      %208 = vmatprep.subr.mxu0 0.0
      %209 = vmatpush1.msra.mxu0 0.0
      %210 = vmatprep.subr.mxu0 0.0
      %211 = vmatpush1.msra.mxu0 0.0
      %212 = vmatprep.subr.mxu0 0.0
      %213 = vmatpush1.msra.mxu0 0.0
      %214 = vmatprep.subr.mxu0 0.0
      %215 = vmatpush1.msra.mxu0 0.0
      %216 = vmatprep.subr.mxu0 0.0
      %217 = vmatpush1.msra.mxu0 0.0
      %218 = vmatprep.subr.mxu0 0.0
      %219 = vmatpush1.msra.mxu0 0.0
      %220 = vmatprep.subr.mxu0 0.0
      %221 = vmatpush1.msra.mxu0 0.0
      %222 = vmatprep.subr.mxu0 0.0
      %223 = vmatpush1.msra.mxu0 0.0
      %224 = vmatprep.subr.mxu0 0.0
      %225 = vmatpush1.msra.mxu0 0.0
      %226 = vmatprep.subr.mxu0 0.0
      %227 = vmatpush1.msra.mxu0 0.0
      %228 = vmatprep.subr.mxu0 0.0
      %229 = vmatpush1.msra.mxu0 0.0
      %230 = vmatprep.subr.mxu0 0.0
      %231 = vmatpush1.msra.mxu0 0.0
      %232 = vmatprep.subr.mxu0 0.0
      %233 = vmatpush1.msra.mxu0 0.0
      %234 = vmatprep.subr.mxu0 0.0
      %235 = vmatpush1.msra.mxu0 0.0
      %236 = vmatprep.subr.mxu0 0.0
      %237 = vmatpush1.msra.mxu0 0.0
      %238 = vmatprep.subr.mxu0 0.0
      %239 = vmatpush1.msra.mxu0 0.0
      %240 = vmatprep.subr.mxu0 0.0
      %241 = vmatpush1.msra.mxu0 0.0
      %242 = vmatprep.subr.mxu0 0.0
      %243 = vmatpush1.msra.mxu0 0.0
      %244 = vmatprep.subr.mxu0 0.0
      %245 = vmatpush1.msra.mxu0 0.0
      %246 = vmatprep.subr.mxu0 0.0
      %247 = vmatpush1.msra.mxu0 0.0
      %248 = vmatprep.subr.mxu0 0.0
      %249 = vmatpush1.msra.mxu0 0.0
      %250 = vmatprep.subr.mxu0 0.0
      %251 = vmatpush1.msra.mxu0 0.0
      %252 = vmatprep.subr.mxu0 0.0
      %253 = vmatpush1.msra.mxu0 0.0
      %254 = vmatprep.subr.mxu0 0.0
      %255 = vmatpush1.msra.mxu0 0.0
      %256 = vmatprep.subr.mxu0 0.0
      %257 = vmatpush1.msra.mxu0 0.0
      %258 = vmatprep.subr.mxu0 0.0
      %259 = vmatpush1.msra.mxu0 0.0
      %260 = vmatprep.subr.mxu0 0.0
      %261 = vmatpush1.msra.mxu0 0.0
      %262 = vmatprep.subr.mxu0 0.0
      %263 = vmatpush1.msra.mxu0 0.0
      %264 = vmatprep.subr.mxu0 0.0
      %265 = vmatpush1.msra.mxu0 0.0
      %266 = vmatprep.subr.mxu0 0.0
      %267 = vmatpush1.msra.mxu0 0.0
      %268 = vmatprep.mubr.f32.mxu0 0.0
      %269 = vmatmul.mubr.f32.gmra.mrb[0].mxu0 %v195
      %v270 = vpop.f32.mrb[0].mxu0
      %v271 = vadd.f32 0.0, %v270
      %v272 = vpop.f32.mrb[0].mxu0
      %v273 = vadd.f32 0.0, %v272
      %274 = vdwg.mxu0
      %275 = vmatprep.subr.mxu0 0.0
      %276 = vmatpush1.msra.mxu0 %v202
      %277 = vmatprep.subr.mxu0 0.0
      %278 = vmatpush1.msra.mxu0 0.0
      %279 = vmatprep.subr.mxu0 0.0
      %280 = vmatpush1.msra.mxu0 0.0
      %281 = vmatprep.subr.mxu0 0.0
      %282 = vmatpush1.msra.mxu0 0.0
      %283 = vmatprep.subr.mxu0 0.0
      %284 = vmatpush1.msra.mxu0 0.0
      %285 = vmatprep.subr.mxu0 0.0
      %286 = vmatpush1.msra.mxu0 0.0
      %287 = vmatprep.subr.mxu0 0.0
      %288 = vmatpush1.msra.mxu0 0.0
      %289 = vmatprep.subr.mxu0 0.0
      %290 = vmatpush1.msra.mxu0 0.0
      %291 = vmatprep.subr.mxu0 0.0
      %292 = vmatpush1.msra.mxu0 0.0
      %293 = vmatprep.subr.mxu0 0.0
      %294 = vmatpush1.msra.mxu0 0.0
      %295 = vmatprep.subr.mxu0 0.0
      %296 = vmatpush1.msra.mxu0 0.0
      %297 = vmatprep.subr.mxu0 0.0
      %298 = vmatpush1.msra.mxu0 0.0
      %299 = vmatprep.subr.mxu0 0.0
      %300 = vmatpush1.msra.mxu0 0.0
      %301 = vmatprep.subr.mxu0 0.0
      %302 = vmatpush1.msra.mxu0 0.0
      %303 = vmatprep.subr.mxu0 0.0
      %304 = vmatpush1.msra.mxu0 0.0
      %305 = vmatprep.subr.mxu0 0.0
      %306 = vmatpush1.msra.mxu0 0.0
      %307 = vmatprep.subr.mxu0 0.0
      %308 = vmatpush1.msra.mxu0 0.0
      %309 = vmatprep.subr.mxu0 0.0
      %310 = vmatpush1.msra.mxu0 0.0
      %311 = vmatprep.subr.mxu0 0.0
      %312 = vmatpush1.msra.mxu0 0.0
      %313 = vmatprep.subr.mxu0 0.0
      %314 = vmatpush1.msra.mxu0 0.0
      %315 = vmatprep.subr.mxu0 0.0
      %316 = vmatpush1.msra.mxu0 0.0
      %317 = vmatprep.subr.mxu0 0.0
      %318 = vmatpush1.msra.mxu0 0.0
      %319 = vmatprep.subr.mxu0 0.0
      %320 = vmatpush1.msra.mxu0 0.0
      %321 = vmatprep.subr.mxu0 0.0
      %322 = vmatpush1.msra.mxu0 0.0
      %323 = vmatprep.subr.mxu0 0.0
      %324 = vmatpush1.msra.mxu0 0.0
      %325 = vmatprep.subr.mxu0 0.0
      %326 = vmatpush1.msra.mxu0 0.0
      %327 = vmatprep.subr.mxu0 0.0
      %328 = vmatpush1.msra.mxu0 0.0
      %329 = vmatprep.subr.mxu0 0.0
      %330 = vmatpush1.msra.mxu0 0.0
      %331 = vmatprep.subr.mxu0 0.0
      %332 = vmatpush1.msra.mxu0 0.0
      %333 = vmatprep.subr.mxu0 0.0
      %334 = vmatpush1.msra.mxu0 0.0
      %335 = vmatprep.subr.mxu0 0.0
      %336 = vmatpush1.msra.mxu0 0.0
      %337 = vmatprep.subr.mxu0 0.0
      %338 = vmatpush1.msra.mxu0 0.0
      %339 = vmatprep.mubr.f32.mxu0 0.0
      %340 = vmatmul.mubr.f32.gmra.mrb[0].mxu0 %v195
      %v341 = vpop.f32.mrb[0].mxu0
      %v342 = vadd.f32 0.0, %v341
      %v343 = vpop.f32.mrb[0].mxu0
      %344 = vdwg.mxu0
      %v347 = vsel %vm193, %v173, 0
      %v349 = vsel %vm197, %v171, 0
      %v351 = vsel %vm197, %v179, 0
      %v353 = vsel %vm197, %v172, 0
      %355 = vmatprep.subr.mxu0 %v351
      %356 = vmatpush1.msra.mxu0 %v349
      %357 = vmatprep.subr.mxu0 0.0
      %358 = vmatpush1.msra.mxu0 0.0
      %359 = vmatprep.subr.mxu0 0.0
      %360 = vmatpush1.msra.mxu0 0.0
      %361 = vmatprep.subr.mxu0 0.0
      %362 = vmatpush1.msra.mxu0 0.0
      %363 = vmatprep.subr.mxu0 0.0
      %364 = vmatpush1.msra.mxu0 0.0
      %365 = vmatprep.subr.mxu0 0.0
      %366 = vmatpush1.msra.mxu0 0.0
      %367 = vmatprep.subr.mxu0 0.0
      %368 = vmatpush1.msra.mxu0 0.0
      %369 = vmatprep.subr.mxu0 0.0
      %370 = vmatpush1.msra.mxu0 0.0
      %371 = vmatprep.subr.mxu0 0.0
      %372 = vmatpush1.msra.mxu0 0.0
      %373 = vmatprep.subr.mxu0 0.0
      %374 = vmatpush1.msra.mxu0 0.0
      %375 = vmatprep.subr.mxu0 0.0
      %376 = vmatpush1.msra.mxu0 0.0
      %377 = vmatprep.subr.mxu0 0.0
      %378 = vmatpush1.msra.mxu0 0.0
      %379 = vmatprep.subr.mxu0 0.0
      %380 = vmatpush1.msra.mxu0 0.0
      %381 = vmatprep.subr.mxu0 0.0
      %382 = vmatpush1.msra.mxu0 0.0
      %383 = vmatprep.subr.mxu0 0.0
      %384 = vmatpush1.msra.mxu0 0.0
      %385 = vmatprep.subr.mxu0 0.0
      %386 = vmatpush1.msra.mxu0 0.0
      %387 = vmatprep.subr.mxu0 0.0
      %388 = vmatpush1.msra.mxu0 0.0
      %389 = vmatprep.subr.mxu0 0.0
      %390 = vmatpush1.msra.mxu0 0.0
      %391 = vmatprep.subr.mxu0 0.0
      %392 = vmatpush1.msra.mxu0 0.0
      %393 = vmatprep.subr.mxu0 0.0
      %394 = vmatpush1.msra.mxu0 0.0
      %395 = vmatprep.subr.mxu0 0.0
      %396 = vmatpush1.msra.mxu0 0.0
      %397 = vmatprep.subr.mxu0 0.0
      %398 = vmatpush1.msra.mxu0 0.0
      %399 = vmatprep.subr.mxu0 0.0
      %400 = vmatpush1.msra.mxu0 0.0
      %401 = vmatprep.subr.mxu0 0.0
      %402 = vmatpush1.msra.mxu0 0.0
      %403 = vmatprep.subr.mxu0 0.0
      %404 = vmatpush1.msra.mxu0 0.0
      %405 = vmatprep.subr.mxu0 0.0
      %406 = vmatpush1.msra.mxu0 0.0
      %407 = vmatprep.subr.mxu0 0.0
      %408 = vmatpush1.msra.mxu0 0.0
      %409 = vmatprep.subr.mxu0 0.0
      %410 = vmatpush1.msra.mxu0 0.0
      %411 = vmatprep.subr.mxu0 0.0
      %412 = vmatpush1.msra.mxu0 0.0
      %413 = vmatprep.subr.mxu0 0.0
      %414 = vmatpush1.msra.mxu0 0.0
      %415 = vmatprep.subr.mxu0 0.0
      %416 = vmatpush1.msra.mxu0 0.0
      %417 = vmatprep.subr.mxu0 0.0
      %418 = vmatpush1.msra.mxu0 0.0
      %419 = vmatprep.mubr.f32.mxu0 0.0
      %420 = vmatmul.mubr.f32.gmra.mrb[0].mxu0 %v347
      %v421 = vpop.f32.mrb[0].mxu0
      %v422 = vadd.f32 %v271, %v421
      %v423 = vpop.f32.mrb[0].mxu0
      %v424 = vadd.f32 %v273, %v423
      %425 = vdwg.mxu0
      %426 = vmatprep.subr.mxu0 0.0
      %427 = vmatpush1.msra.mxu0 %v353
      %428 = vmatprep.subr.mxu0 0.0
      %429 = vmatpush1.msra.mxu0 0.0
      %430 = vmatprep.subr.mxu0 0.0
      %431 = vmatpush1.msra.mxu0 0.0
      %432 = vmatprep.subr.mxu0 0.0
      %433 = vmatpush1.msra.mxu0 0.0
      %434 = vmatprep.subr.mxu0 0.0
      %435 = vmatpush1.msra.mxu0 0.0
      %436 = vmatprep.subr.mxu0 0.0
      %437 = vmatpush1.msra.mxu0 0.0
      %438 = vmatprep.subr.mxu0 0.0
      %439 = vmatpush1.msra.mxu0 0.0
      %440 = vmatprep.subr.mxu0 0.0
      %441 = vmatpush1.msra.mxu0 0.0
      %442 = vmatprep.subr.mxu0 0.0
      %443 = vmatpush1.msra.mxu0 0.0
      %444 = vmatprep.subr.mxu0 0.0
      %445 = vmatpush1.msra.mxu0 0.0
      %446 = vmatprep.subr.mxu0 0.0
      %447 = vmatpush1.msra.mxu0 0.0
      %448 = vmatprep.subr.mxu0 0.0
      %449 = vmatpush1.msra.mxu0 0.0
      %450 = vmatprep.subr.mxu0 0.0
      %451 = vmatpush1.msra.mxu0 0.0
      %452 = vmatprep.subr.mxu0 0.0
      %453 = vmatpush1.msra.mxu0 0.0
      %454 = vmatprep.subr.mxu0 0.0
      %455 = vmatpush1.msra.mxu0 0.0
      %456 = vmatprep.subr.mxu0 0.0
      %457 = vmatpush1.msra.mxu0 0.0
      %458 = vmatprep.subr.mxu0 0.0
      %459 = vmatpush1.msra.mxu0 0.0
      %460 = vmatprep.subr.mxu0 0.0
      %461 = vmatpush1.msra.mxu0 0.0
      %462 = vmatprep.subr.mxu0 0.0
      %463 = vmatpush1.msra.mxu0 0.0
      %464 = vmatprep.subr.mxu0 0.0
      %465 = vmatpush1.msra.mxu0 0.0
      %466 = vmatprep.subr.mxu0 0.0
      %467 = vmatpush1.msra.mxu0 0.0
      %468 = vmatprep.subr.mxu0 0.0
      %469 = vmatpush1.msra.mxu0 0.0
      %470 = vmatprep.subr.mxu0 0.0
      %471 = vmatpush1.msra.mxu0 0.0
      %472 = vmatprep.subr.mxu0 0.0
      %473 = vmatpush1.msra.mxu0 0.0
      %474 = vmatprep.subr.mxu0 0.0
      %475 = vmatpush1.msra.mxu0 0.0
      %476 = vmatprep.subr.mxu0 0.0
      %477 = vmatpush1.msra.mxu0 0.0
      %478 = vmatprep.subr.mxu0 0.0
      %479 = vmatpush1.msra.mxu0 0.0
      %480 = vmatprep.subr.mxu0 0.0
      %481 = vmatpush1.msra.mxu0 0.0
      %482 = vmatprep.subr.mxu0 0.0
      %483 = vmatpush1.msra.mxu0 0.0
      %484 = vmatprep.subr.mxu0 0.0
      %485 = vmatpush1.msra.mxu0 0.0
      %486 = vmatprep.subr.mxu0 0.0
      %487 = vmatpush1.msra.mxu0 0.0
      %488 = vmatprep.subr.mxu0 0.0
      %489 = vmatpush1.msra.mxu0 0.0
      %490 = vmatprep.mubr.f32.mxu0 0.0
      %491 = vmatmul.mubr.f32.gmra.mrb[0].mxu0 %v347
      %v492 = vpop.f32.mrb[0].mxu0
      %v493 = vadd.f32 %v342, %v492
      %v494 = vpop.f32.mrb[0].mxu0
      %495 = vdwg.mxu0
      %v496 = vld [vmem:[%s165] sm:$0xff]
      %v497 = vld [vmem:[%s165 + $0x8] sm:$0xff]
      %s498 = scalar_lea.vmem %s1, 16
      %v499 = vld [vmem:[%s498] sm:$0xff]
      %v502 = vcombine.high %v496, %v496
      %v503 = vcombine.high %v497, %v497
      %504 = vrot.lane.b32.xlu0 %v496, 126
      %v505 = vpop.permute.xlu0 %504
      %506 = vrot.lane.b32.xlu0 %v502, 126
      %v507 = vpop.permute.xlu0 %506
      %508 = vrot.lane.b32.xlu0 %v497, 126
      %v509 = vpop.permute.xlu0 %508
      %510 = vrot.lane.b32.xlu0 %v503, 126
      %v511 = vpop.permute.xlu0 %510
      %vm512 = vcmask 1031168
      %v513 = vsel %vm512, %v505, %v507
      %v514 = vsel %vm512, %v507, %v509
      %v515 = vsel %vm512, %v509, %v511
      %v517 = vsel %vm193, %v499, 0
      %v519 = vsel %vm197, %v513, 0
      %v521 = vsel %vm197, %v514, 0
      %v523 = vsel %vm197, %v515, 0
      %525 = vmatprep.subr.mxu0 %v521
      %526 = vmatpush1.msra.mxu0 %v519
      %527 = vmatprep.subr.mxu0 0.0
      %528 = vmatpush1.msra.mxu0 0.0
      %529 = vmatprep.subr.mxu0 0.0
      %530 = vmatpush1.msra.mxu0 0.0
      %531 = vmatprep.subr.mxu0 0.0
      %532 = vmatpush1.msra.mxu0 0.0
      %533 = vmatprep.subr.mxu0 0.0
      %534 = vmatpush1.msra.mxu0 0.0
      %535 = vmatprep.subr.mxu0 0.0
      %536 = vmatpush1.msra.mxu0 0.0
      %537 = vmatprep.subr.mxu0 0.0
      %538 = vmatpush1.msra.mxu0 0.0
      %539 = vmatprep.subr.mxu0 0.0
      %540 = vmatpush1.msra.mxu0 0.0
      %541 = vmatprep.subr.mxu0 0.0
      %542 = vmatpush1.msra.mxu0 0.0
      %543 = vmatprep.subr.mxu0 0.0
      %544 = vmatpush1.msra.mxu0 0.0
      %545 = vmatprep.subr.mxu0 0.0
      %546 = vmatpush1.msra.mxu0 0.0
      %547 = vmatprep.subr.mxu0 0.0
      %548 = vmatpush1.msra.mxu0 0.0
      %549 = vmatprep.subr.mxu0 0.0
      %550 = vmatpush1.msra.mxu0 0.0
      %551 = vmatprep.subr.mxu0 0.0
      %552 = vmatpush1.msra.mxu0 0.0
      %553 = vmatprep.subr.mxu0 0.0
      %554 = vmatpush1.msra.mxu0 0.0
      %555 = vmatprep.subr.mxu0 0.0
      %556 = vmatpush1.msra.mxu0 0.0
      %557 = vmatprep.subr.mxu0 0.0
      %558 = vmatpush1.msra.mxu0 0.0
      %559 = vmatprep.subr.mxu0 0.0
      %560 = vmatpush1.msra.mxu0 0.0
      %561 = vmatprep.subr.mxu0 0.0
      %562 = vmatpush1.msra.mxu0 0.0
      %563 = vmatprep.subr.mxu0 0.0
      %564 = vmatpush1.msra.mxu0 0.0
      %565 = vmatprep.subr.mxu0 0.0
      %566 = vmatpush1.msra.mxu0 0.0
      %567 = vmatprep.subr.mxu0 0.0
      %568 = vmatpush1.msra.mxu0 0.0
      %569 = vmatprep.subr.mxu0 0.0
      %570 = vmatpush1.msra.mxu0 0.0
      %571 = vmatprep.subr.mxu0 0.0
      %572 = vmatpush1.msra.mxu0 0.0
      %573 = vmatprep.subr.mxu0 0.0
      %574 = vmatpush1.msra.mxu0 0.0
      %575 = vmatprep.subr.mxu0 0.0
      %576 = vmatpush1.msra.mxu0 0.0
      %577 = vmatprep.subr.mxu0 0.0
      %578 = vmatpush1.msra.mxu0 0.0
      %579 = vmatprep.subr.mxu0 0.0
      %580 = vmatpush1.msra.mxu0 0.0
      %581 = vmatprep.subr.mxu0 0.0
      %582 = vmatpush1.msra.mxu0 0.0
      %583 = vmatprep.subr.mxu0 0.0
      %584 = vmatpush1.msra.mxu0 0.0
      %585 = vmatprep.subr.mxu0 0.0
      %586 = vmatpush1.msra.mxu0 0.0
      %587 = vmatprep.subr.mxu0 0.0
      %588 = vmatpush1.msra.mxu0 0.0
      %589 = vmatprep.mubr.f32.mxu0 0.0
      %590 = vmatmul.mubr.f32.gmra.mrb[0].mxu0 %v517
      %v591 = vpop.f32.mrb[0].mxu0
      %v592 = vadd.f32 0.0, %v591
      %v593 = vpop.f32.mrb[0].mxu0
      %v594 = vadd.f32 0.0, %v593
      %595 = vdwg.mxu0
      %596 = vmatprep.subr.mxu0 0.0
      %597 = vmatpush1.msra.mxu0 %v523
      %598 = vmatprep.subr.mxu0 0.0
      %599 = vmatpush1.msra.mxu0 0.0
      %600 = vmatprep.subr.mxu0 0.0
      %601 = vmatpush1.msra.mxu0 0.0
      %602 = vmatprep.subr.mxu0 0.0
      %603 = vmatpush1.msra.mxu0 0.0
      %604 = vmatprep.subr.mxu0 0.0
      %605 = vmatpush1.msra.mxu0 0.0
      %606 = vmatprep.subr.mxu0 0.0
      %607 = vmatpush1.msra.mxu0 0.0
      %608 = vmatprep.subr.mxu0 0.0
      %609 = vmatpush1.msra.mxu0 0.0
      %610 = vmatprep.subr.mxu0 0.0
      %611 = vmatpush1.msra.mxu0 0.0
      %612 = vmatprep.subr.mxu0 0.0
      %613 = vmatpush1.msra.mxu0 0.0
      %614 = vmatprep.subr.mxu0 0.0
      %615 = vmatpush1.msra.mxu0 0.0
      %616 = vmatprep.subr.mxu0 0.0
      %617 = vmatpush1.msra.mxu0 0.0
      %618 = vmatprep.subr.mxu0 0.0
      %619 = vmatpush1.msra.mxu0 0.0
      %620 = vmatprep.subr.mxu0 0.0
      %621 = vmatpush1.msra.mxu0 0.0
      %622 = vmatprep.subr.mxu0 0.0
      %623 = vmatpush1.msra.mxu0 0.0
      %624 = vmatprep.subr.mxu0 0.0
      %625 = vmatpush1.msra.mxu0 0.0
      %626 = vmatprep.subr.mxu0 0.0
      %627 = vmatpush1.msra.mxu0 0.0
      %628 = vmatprep.subr.mxu0 0.0
      %629 = vmatpush1.msra.mxu0 0.0
      %630 = vmatprep.subr.mxu0 0.0
      %631 = vmatpush1.msra.mxu0 0.0
      %632 = vmatprep.subr.mxu0 0.0
      %633 = vmatpush1.msra.mxu0 0.0
      %634 = vmatprep.subr.mxu0 0.0
      %635 = vmatpush1.msra.mxu0 0.0
      %636 = vmatprep.subr.mxu0 0.0
      %637 = vmatpush1.msra.mxu0 0.0
      %638 = vmatprep.subr.mxu0 0.0
      %639 = vmatpush1.msra.mxu0 0.0
      %640 = vmatprep.subr.mxu0 0.0
      %641 = vmatpush1.msra.mxu0 0.0
      %642 = vmatprep.subr.mxu0 0.0
      %643 = vmatpush1.msra.mxu0 0.0
      %644 = vmatprep.subr.mxu0 0.0
      %645 = vmatpush1.msra.mxu0 0.0
      %646 = vmatprep.subr.mxu0 0.0
      %647 = vmatpush1.msra.mxu0 0.0
      %648 = vmatprep.subr.mxu0 0.0
      %649 = vmatpush1.msra.mxu0 0.0
      %650 = vmatprep.subr.mxu0 0.0
      %651 = vmatpush1.msra.mxu0 0.0
      %652 = vmatprep.subr.mxu0 0.0
      %653 = vmatpush1.msra.mxu0 0.0
      %654 = vmatprep.subr.mxu0 0.0
      %655 = vmatpush1.msra.mxu0 0.0
      %656 = vmatprep.subr.mxu0 0.0
      %657 = vmatpush1.msra.mxu0 0.0
      %658 = vmatprep.subr.mxu0 0.0
      %659 = vmatpush1.msra.mxu0 0.0
      %660 = vmatprep.mubr.f32.mxu0 0.0
      %661 = vmatmul.mubr.f32.gmra.mrb[0].mxu0 %v517
      %v662 = vpop.f32.mrb[0].mxu0
      %v663 = vadd.f32 0.0, %v662
      %v664 = vpop.f32.mrb[0].mxu0
      %665 = vdwg.mxu0
      %v666 = vadd.f32 %v422, %v592
      %v667 = vadd.f32 %v424, %v594
      %v668 = vadd.f32 %v493, %v663
      %v669 = vld [vmem:[%s165] sm:$0xff]
      %v670 = vld [vmem:[%s165 + $0x8] sm:$0xff]
      %s671 = scalar_lea.vmem %s1, 24
      %v672 = vld [vmem:[%s671] sm:$0xff]
      %v675 = vcombine.high %v669, %v669
      %v676 = vcombine.high %v670, %v670
      %677 = vrot.lane.b32.xlu0 %v669, 110
      %v678 = vpop.permute.xlu0 %677
      %679 = vrot.lane.b32.xlu0 %v675, 110
      %v680 = vpop.permute.xlu0 %679
      %681 = vrot.lane.b32.xlu0 %v670, 110
      %v682 = vpop.permute.xlu0 %681
      %683 = vrot.lane.b32.xlu0 %v676, 110
      %v684 = vpop.permute.xlu0 %683
      %vm685 = vcmask 900096
      %v686 = vsel %vm685, %v678, %v680
      %v687 = vsel %vm685, %v680, %v682
      %v688 = vsel %vm685, %v682, %v684
      %v690 = vsel %vm193, %v672, 0
      %v692 = vsel %vm197, %v686, 0
      %v694 = vsel %vm197, %v687, 0
      %v696 = vsel %vm197, %v688, 0
      %698 = vmatprep.subr.mxu0 %v694
      %699 = vmatpush1.msra.mxu0 %v692
      %700 = vmatprep.subr.mxu0 0.0
      %701 = vmatpush1.msra.mxu0 0.0
      %702 = vmatprep.subr.mxu0 0.0
      %703 = vmatpush1.msra.mxu0 0.0
      %704 = vmatprep.subr.mxu0 0.0
      %705 = vmatpush1.msra.mxu0 0.0
      %706 = vmatprep.subr.mxu0 0.0
      %707 = vmatpush1.msra.mxu0 0.0
      %708 = vmatprep.subr.mxu0 0.0
      %709 = vmatpush1.msra.mxu0 0.0
      %710 = vmatprep.subr.mxu0 0.0
      %711 = vmatpush1.msra.mxu0 0.0
      %712 = vmatprep.subr.mxu0 0.0
      %713 = vmatpush1.msra.mxu0 0.0
      %714 = vmatprep.subr.mxu0 0.0
      %715 = vmatpush1.msra.mxu0 0.0
      %716 = vmatprep.subr.mxu0 0.0
      %717 = vmatpush1.msra.mxu0 0.0
      %718 = vmatprep.subr.mxu0 0.0
      %719 = vmatpush1.msra.mxu0 0.0
      %720 = vmatprep.subr.mxu0 0.0
      %721 = vmatpush1.msra.mxu0 0.0
      %722 = vmatprep.subr.mxu0 0.0
      %723 = vmatpush1.msra.mxu0 0.0
      %724 = vmatprep.subr.mxu0 0.0
      %725 = vmatpush1.msra.mxu0 0.0
      %726 = vmatprep.subr.mxu0 0.0
      %727 = vmatpush1.msra.mxu0 0.0
      %728 = vmatprep.subr.mxu0 0.0
      %729 = vmatpush1.msra.mxu0 0.0
      %730 = vmatprep.subr.mxu0 0.0
      %731 = vmatpush1.msra.mxu0 0.0
      %732 = vmatprep.subr.mxu0 0.0
      %733 = vmatpush1.msra.mxu0 0.0
      %734 = vmatprep.subr.mxu0 0.0
      %735 = vmatpush1.msra.mxu0 0.0
      %736 = vmatprep.subr.mxu0 0.0
      %737 = vmatpush1.msra.mxu0 0.0
      %738 = vmatprep.subr.mxu0 0.0
      %739 = vmatpush1.msra.mxu0 0.0
      %740 = vmatprep.subr.mxu0 0.0
      %741 = vmatpush1.msra.mxu0 0.0
      %742 = vmatprep.subr.mxu0 0.0
      %743 = vmatpush1.msra.mxu0 0.0
      %744 = vmatprep.subr.mxu0 0.0
      %745 = vmatpush1.msra.mxu0 0.0
      %746 = vmatprep.subr.mxu0 0.0
      %747 = vmatpush1.msra.mxu0 0.0
      %748 = vmatprep.subr.mxu0 0.0
      %749 = vmatpush1.msra.mxu0 0.0
      %750 = vmatprep.subr.mxu0 0.0
      %751 = vmatpush1.msra.mxu0 0.0
      %752 = vmatprep.subr.mxu0 0.0
      %753 = vmatpush1.msra.mxu0 0.0
      %754 = vmatprep.subr.mxu0 0.0
      %755 = vmatpush1.msra.mxu0 0.0
      %756 = vmatprep.subr.mxu0 0.0
      %757 = vmatpush1.msra.mxu0 0.0
      %758 = vmatprep.subr.mxu0 0.0
      %759 = vmatpush1.msra.mxu0 0.0
      %760 = vmatprep.subr.mxu0 0.0
      %761 = vmatpush1.msra.mxu0 0.0
      %762 = vmatprep.mubr.f32.mxu0 0.0
      %763 = vmatmul.mubr.f32.gmra.mrb[0].mxu0 %v690
      %v764 = vpop.f32.mrb[0].mxu0
      %v765 = vadd.f32 0.0, %v764
      %v766 = vpop.f32.mrb[0].mxu0
      %v767 = vadd.f32 0.0, %v766
      %768 = vdwg.mxu0
      %769 = vmatprep.subr.mxu0 0.0
      %770 = vmatpush1.msra.mxu0 %v696
      %771 = vmatprep.subr.mxu0 0.0
      %772 = vmatpush1.msra.mxu0 0.0
      %773 = vmatprep.subr.mxu0 0.0
      %774 = vmatpush1.msra.mxu0 0.0
      %775 = vmatprep.subr.mxu0 0.0
      %776 = vmatpush1.msra.mxu0 0.0
      %777 = vmatprep.subr.mxu0 0.0
      %778 = vmatpush1.msra.mxu0 0.0
      %779 = vmatprep.subr.mxu0 0.0
      %780 = vmatpush1.msra.mxu0 0.0
      %781 = vmatprep.subr.mxu0 0.0
      %782 = vmatpush1.msra.mxu0 0.0
      %783 = vmatprep.subr.mxu0 0.0
      %784 = vmatpush1.msra.mxu0 0.0
      %785 = vmatprep.subr.mxu0 0.0
      %786 = vmatpush1.msra.mxu0 0.0
      %787 = vmatprep.subr.mxu0 0.0
      %788 = vmatpush1.msra.mxu0 0.0
      %789 = vmatprep.subr.mxu0 0.0
      %790 = vmatpush1.msra.mxu0 0.0
      %791 = vmatprep.subr.mxu0 0.0
      %792 = vmatpush1.msra.mxu0 0.0
      %793 = vmatprep.subr.mxu0 0.0
      %794 = vmatpush1.msra.mxu0 0.0
      %795 = vmatprep.subr.mxu0 0.0
      %796 = vmatpush1.msra.mxu0 0.0
      %797 = vmatprep.subr.mxu0 0.0
      %798 = vmatpush1.msra.mxu0 0.0
      %799 = vmatprep.subr.mxu0 0.0
      %800 = vmatpush1.msra.mxu0 0.0
      %801 = vmatprep.subr.mxu0 0.0
      %802 = vmatpush1.msra.mxu0 0.0
      %803 = vmatprep.subr.mxu0 0.0
      %804 = vmatpush1.msra.mxu0 0.0
      %805 = vmatprep.subr.mxu0 0.0
      %806 = vmatpush1.msra.mxu0 0.0
      %807 = vmatprep.subr.mxu0 0.0
      %808 = vmatpush1.msra.mxu0 0.0
      %809 = vmatprep.subr.mxu0 0.0
      %810 = vmatpush1.msra.mxu0 0.0
      %811 = vmatprep.subr.mxu0 0.0
      %812 = vmatpush1.msra.mxu0 0.0
      %813 = vmatprep.subr.mxu0 0.0
      %814 = vmatpush1.msra.mxu0 0.0
      %815 = vmatprep.subr.mxu0 0.0
      %816 = vmatpush1.msra.mxu0 0.0
      %817 = vmatprep.subr.mxu0 0.0
      %818 = vmatpush1.msra.mxu0 0.0
      %819 = vmatprep.subr.mxu0 0.0
      %820 = vmatpush1.msra.mxu0 0.0
      %821 = vmatprep.subr.mxu0 0.0
      %822 = vmatpush1.msra.mxu0 0.0
      %823 = vmatprep.subr.mxu0 0.0
      %824 = vmatpush1.msra.mxu0 0.0
      %825 = vmatprep.subr.mxu0 0.0
      %826 = vmatpush1.msra.mxu0 0.0
      %827 = vmatprep.subr.mxu0 0.0
      %828 = vmatpush1.msra.mxu0 0.0
      %829 = vmatprep.subr.mxu0 0.0
      %830 = vmatpush1.msra.mxu0 0.0
      %831 = vmatprep.subr.mxu0 0.0
      %832 = vmatpush1.msra.mxu0 0.0
      %833 = vmatprep.mubr.f32.mxu0 0.0
      %834 = vmatmul.mubr.f32.gmra.mrb[0].mxu0 %v690
      %v835 = vpop.f32.mrb[0].mxu0
      %v836 = vadd.f32 0.0, %v835
      %v837 = vpop.f32.mrb[0].mxu0
      %838 = vdwg.mxu0
      %v839 = vadd.f32 %v666, %v765
      %v840 = vadd.f32 %v667, %v767
      %v841 = vadd.f32 %v668, %v836
      %v842 = vld [vmem:[%s165] sm:$0xff]
      %v843 = vld [vmem:[%s165 + $0x8] sm:$0xff]
      %s844 = scalar_lea.vmem %s1, 32
      %v845 = vld [vmem:[%s844] sm:$0xff]
      %v848 = vcombine.high %v842, %v842
      %v849 = vcombine.high %v843, %v843
      %850 = vrot.lane.b32.xlu0 %v842, 109
      %v851 = vpop.permute.xlu0 %850
      %852 = vrot.lane.b32.xlu0 %v848, 109
      %v853 = vpop.permute.xlu0 %852
      %854 = vrot.lane.b32.xlu0 %v843, 109
      %v855 = vpop.permute.xlu0 %854
      %856 = vrot.lane.b32.xlu0 %v849, 109
      %v857 = vpop.permute.xlu0 %856
      %vm858 = vcmask 891904
      %v859 = vsel %vm858, %v851, %v853
      %v860 = vsel %vm858, %v853, %v855
      %v861 = vsel %vm858, %v855, %v857
      %v863 = vsel %vm193, %v845, 0
      %v865 = vsel %vm197, %v859, 0
      %v867 = vsel %vm197, %v860, 0
      %v869 = vsel %vm197, %v861, 0
      %871 = vmatprep.subr.mxu0 %v867
      %872 = vmatpush1.msra.mxu0 %v865
      %873 = vmatprep.subr.mxu0 0.0
      %874 = vmatpush1.msra.mxu0 0.0
      %875 = vmatprep.subr.mxu0 0.0
      %876 = vmatpush1.msra.mxu0 0.0
      %877 = vmatprep.subr.mxu0 0.0
      %878 = vmatpush1.msra.mxu0 0.0
      %879 = vmatprep.subr.mxu0 0.0
      %880 = vmatpush1.msra.mxu0 0.0
      %881 = vmatprep.subr.mxu0 0.0
      %882 = vmatpush1.msra.mxu0 0.0
      %883 = vmatprep.subr.mxu0 0.0
      %884 = vmatpush1.msra.mxu0 0.0
      %885 = vmatprep.subr.mxu0 0.0
      %886 = vmatpush1.msra.mxu0 0.0
      %887 = vmatprep.subr.mxu0 0.0
      %888 = vmatpush1.msra.mxu0 0.0
      %889 = vmatprep.subr.mxu0 0.0
      %890 = vmatpush1.msra.mxu0 0.0
      %891 = vmatprep.subr.mxu0 0.0
      %892 = vmatpush1.msra.mxu0 0.0
      %893 = vmatprep.subr.mxu0 0.0
      %894 = vmatpush1.msra.mxu0 0.0
      %895 = vmatprep.subr.mxu0 0.0
      %896 = vmatpush1.msra.mxu0 0.0
      %897 = vmatprep.subr.mxu0 0.0
      %898 = vmatpush1.msra.mxu0 0.0
      %899 = vmatprep.subr.mxu0 0.0
      %900 = vmatpush1.msra.mxu0 0.0
      %901 = vmatprep.subr.mxu0 0.0
      %902 = vmatpush1.msra.mxu0 0.0
      %903 = vmatprep.subr.mxu0 0.0
      %904 = vmatpush1.msra.mxu0 0.0
      %905 = vmatprep.subr.mxu0 0.0
      %906 = vmatpush1.msra.mxu0 0.0
      %907 = vmatprep.subr.mxu0 0.0
      %908 = vmatpush1.msra.mxu0 0.0
      %909 = vmatprep.subr.mxu0 0.0
      %910 = vmatpush1.msra.mxu0 0.0
      %911 = vmatprep.subr.mxu0 0.0
      %912 = vmatpush1.msra.mxu0 0.0
      %913 = vmatprep.subr.mxu0 0.0
      %914 = vmatpush1.msra.mxu0 0.0
      %915 = vmatprep.subr.mxu0 0.0
      %916 = vmatpush1.msra.mxu0 0.0
      %917 = vmatprep.subr.mxu0 0.0
      %918 = vmatpush1.msra.mxu0 0.0
      %919 = vmatprep.subr.mxu0 0.0
      %920 = vmatpush1.msra.mxu0 0.0
      %921 = vmatprep.subr.mxu0 0.0
      %922 = vmatpush1.msra.mxu0 0.0
      %923 = vmatprep.subr.mxu0 0.0
      %924 = vmatpush1.msra.mxu0 0.0
      %925 = vmatprep.subr.mxu0 0.0
      %926 = vmatpush1.msra.mxu0 0.0
      %927 = vmatprep.subr.mxu0 0.0
      %928 = vmatpush1.msra.mxu0 0.0
      %929 = vmatprep.subr.mxu0 0.0
      %930 = vmatpush1.msra.mxu0 0.0
      %931 = vmatprep.subr.mxu0 0.0
      %932 = vmatpush1.msra.mxu0 0.0
      %933 = vmatprep.subr.mxu0 0.0
      %934 = vmatpush1.msra.mxu0 0.0
      %935 = vmatprep.mubr.f32.mxu0 0.0
      %936 = vmatmul.mubr.f32.gmra.mrb[0].mxu0 %v863
      %v937 = vpop.f32.mrb[0].mxu0
      %v938 = vadd.f32 0.0, %v937
      %v939 = vpop.f32.mrb[0].mxu0
      %v940 = vadd.f32 0.0, %v939
      %941 = vdwg.mxu0
      %942 = vmatprep.subr.mxu0 0.0
      %943 = vmatpush1.msra.mxu0 %v869
      %944 = vmatprep.subr.mxu0 0.0
      %945 = vmatpush1.msra.mxu0 0.0
      %946 = vmatprep.subr.mxu0 0.0
      %947 = vmatpush1.msra.mxu0 0.0
      %948 = vmatprep.subr.mxu0 0.0
      %949 = vmatpush1.msra.mxu0 0.0
      %950 = vmatprep.subr.mxu0 0.0
      %951 = vmatpush1.msra.mxu0 0.0
      %952 = vmatprep.subr.mxu0 0.0
      %953 = vmatpush1.msra.mxu0 0.0
      %954 = vmatprep.subr.mxu0 0.0
      %955 = vmatpush1.msra.mxu0 0.0
      %956 = vmatprep.subr.mxu0 0.0
      %957 = vmatpush1.msra.mxu0 0.0
      %958 = vmatprep.subr.mxu0 0.0
      %959 = vmatpush1.msra.mxu0 0.0
      %960 = vmatprep.subr.mxu0 0.0
      %961 = vmatpush1.msra.mxu0 0.0
      %962 = vmatprep.subr.mxu0 0.0
      %963 = vmatpush1.msra.mxu0 0.0
      %964 = vmatprep.subr.mxu0 0.0
      %965 = vmatpush1.msra.mxu0 0.0
      %966 = vmatprep.subr.mxu0 0.0
      %967 = vmatpush1.msra.mxu0 0.0
      %968 = vmatprep.subr.mxu0 0.0
      %969 = vmatpush1.msra.mxu0 0.0
      %970 = vmatprep.subr.mxu0 0.0
      %971 = vmatpush1.msra.mxu0 0.0
      %972 = vmatprep.subr.mxu0 0.0
      %973 = vmatpush1.msra.mxu0 0.0
      %974 = vmatprep.subr.mxu0 0.0
      %975 = vmatpush1.msra.mxu0 0.0
      %976 = vmatprep.subr.mxu0 0.0
      %977 = vmatpush1.msra.mxu0 0.0
      %978 = vmatprep.subr.mxu0 0.0
      %979 = vmatpush1.msra.mxu0 0.0
      %980 = vmatprep.subr.mxu0 0.0
      %981 = vmatpush1.msra.mxu0 0.0
      %982 = vmatprep.subr.mxu0 0.0
      %983 = vmatpush1.msra.mxu0 0.0
      %984 = vmatprep.subr.mxu0 0.0
      %985 = vmatpush1.msra.mxu0 0.0
      %986 = vmatprep.subr.mxu0 0.0
      %987 = vmatpush1.msra.mxu0 0.0
      %988 = vmatprep.subr.mxu0 0.0
      %989 = vmatpush1.msra.mxu0 0.0
      %990 = vmatprep.subr.mxu0 0.0
      %991 = vmatpush1.msra.mxu0 0.0
      %992 = vmatprep.subr.mxu0 0.0
      %993 = vmatpush1.msra.mxu0 0.0
      %994 = vmatprep.subr.mxu0 0.0
      %995 = vmatpush1.msra.mxu0 0.0
      %996 = vmatprep.subr.mxu0 0.0
      %997 = vmatpush1.msra.mxu0 0.0
      %998 = vmatprep.subr.mxu0 0.0
      %999 = vmatpush1.msra.mxu0 0.0
      %1000 = vmatprep.subr.mxu0 0.0
      %1001 = vmatpush1.msra.mxu0 0.0
      %1002 = vmatprep.subr.mxu0 0.0
      %1003 = vmatpush1.msra.mxu0 0.0
      %1004 = vmatprep.subr.mxu0 0.0
      %1005 = vmatpush1.msra.mxu0 0.0
      %1006 = vmatprep.mubr.f32.mxu0 0.0
      %1007 = vmatmul.mubr.f32.gmra.mrb[0].mxu0 %v863
      %v1008 = vpop.f32.mrb[0].mxu0
      %v1009 = vadd.f32 0.0, %v1008
      %v1010 = vpop.f32.mrb[0].mxu0
      %1011 = vdwg.mxu0
      %v1012 = vadd.f32 %v839, %v938
      %v1013 = vadd.f32 %v840, %v940
      %v1014 = vadd.f32 %v841, %v1009
      %v1015 = vld [vmem:[%s165] sm:$0xff]
      %v1016 = vld [vmem:[%s165 + $0x8] sm:$0xff]
      %s1017 = scalar_lea.vmem %s1, 40
      %v1018 = vld [vmem:[%s1017] sm:$0xff]
      %v1021 = vcombine.high %v1015, %v1015
      %v1022 = vcombine.high %v1016, %v1016
      %1023 = vrot.lane.b32.xlu0 %v1015, 108
      %v1024 = vpop.permute.xlu0 %1023
      %1025 = vrot.lane.b32.xlu0 %v1021, 108
      %v1026 = vpop.permute.xlu0 %1025
      %1027 = vrot.lane.b32.xlu0 %v1016, 108
      %v1028 = vpop.permute.xlu0 %1027
      %1029 = vrot.lane.b32.xlu0 %v1022, 108
      %v1030 = vpop.permute.xlu0 %1029
      %vm1031 = vcmask 883712
      %v1032 = vsel %vm1031, %v1024, %v1026
      %v1033 = vsel %vm1031, %v1026, %v1028
      %v1034 = vsel %vm1031, %v1028, %v1030
      %v1036 = vsel %vm193, %v1018, 0
      %v1038 = vsel %vm197, %v1032, 0
      %v1040 = vsel %vm197, %v1033, 0
      %v1042 = vsel %vm197, %v1034, 0
      %1044 = vmatprep.subr.mxu0 %v1040
      %1045 = vmatpush1.msra.mxu0 %v1038
      %1046 = vmatprep.subr.mxu0 0.0
      %1047 = vmatpush1.msra.mxu0 0.0
      %1048 = vmatprep.subr.mxu0 0.0
      %1049 = vmatpush1.msra.mxu0 0.0
      %1050 = vmatprep.subr.mxu0 0.0
      %1051 = vmatpush1.msra.mxu0 0.0
      %1052 = vmatprep.subr.mxu0 0.0
      %1053 = vmatpush1.msra.mxu0 0.0
      %1054 = vmatprep.subr.mxu0 0.0
      %1055 = vmatpush1.msra.mxu0 0.0
      %1056 = vmatprep.subr.mxu0 0.0
      %1057 = vmatpush1.msra.mxu0 0.0
      %1058 = vmatprep.subr.mxu0 0.0
      %1059 = vmatpush1.msra.mxu0 0.0
      %1060 = vmatprep.subr.mxu0 0.0
      %1061 = vmatpush1.msra.mxu0 0.0
      %1062 = vmatprep.subr.mxu0 0.0
      %1063 = vmatpush1.msra.mxu0 0.0
      %1064 = vmatprep.subr.mxu0 0.0
      %1065 = vmatpush1.msra.mxu0 0.0
      %1066 = vmatprep.subr.mxu0 0.0
      %1067 = vmatpush1.msra.mxu0 0.0
      %1068 = vmatprep.subr.mxu0 0.0
      %1069 = vmatpush1.msra.mxu0 0.0
      %1070 = vmatprep.subr.mxu0 0.0
      %1071 = vmatpush1.msra.mxu0 0.0
      %1072 = vmatprep.subr.mxu0 0.0
      %1073 = vmatpush1.msra.mxu0 0.0
      %1074 = vmatprep.subr.mxu0 0.0
      %1075 = vmatpush1.msra.mxu0 0.0
      %1076 = vmatprep.subr.mxu0 0.0
      %1077 = vmatpush1.msra.mxu0 0.0
      %1078 = vmatprep.subr.mxu0 0.0
      %1079 = vmatpush1.msra.mxu0 0.0
      %1080 = vmatprep.subr.mxu0 0.0
      %1081 = vmatpush1.msra.mxu0 0.0
      %1082 = vmatprep.subr.mxu0 0.0
      %1083 = vmatpush1.msra.mxu0 0.0
      %1084 = vmatprep.subr.mxu0 0.0
      %1085 = vmatpush1.msra.mxu0 0.0
      %1086 = vmatprep.subr.mxu0 0.0
      %1087 = vmatpush1.msra.mxu0 0.0
      %1088 = vmatprep.subr.mxu0 0.0
      %1089 = vmatpush1.msra.mxu0 0.0
      %1090 = vmatprep.subr.mxu0 0.0
      %1091 = vmatpush1.msra.mxu0 0.0
      %1092 = vmatprep.subr.mxu0 0.0
      %1093 = vmatpush1.msra.mxu0 0.0
      %1094 = vmatprep.subr.mxu0 0.0
      %1095 = vmatpush1.msra.mxu0 0.0
      %1096 = vmatprep.subr.mxu0 0.0
      %1097 = vmatpush1.msra.mxu0 0.0
      %1098 = vmatprep.subr.mxu0 0.0
      %1099 = vmatpush1.msra.mxu0 0.0
      %1100 = vmatprep.subr.mxu0 0.0
      %1101 = vmatpush1.msra.mxu0 0.0
      %1102 = vmatprep.subr.mxu0 0.0
      %1103 = vmatpush1.msra.mxu0 0.0
      %1104 = vmatprep.subr.mxu0 0.0
      %1105 = vmatpush1.msra.mxu0 0.0
      %1106 = vmatprep.subr.mxu0 0.0
      %1107 = vmatpush1.msra.mxu0 0.0
      %1108 = vmatprep.mubr.f32.mxu0 0.0
      %1109 = vmatmul.mubr.f32.gmra.mrb[0].mxu0 %v1036
      %v1110 = vpop.f32.mrb[0].mxu0
      %v1111 = vadd.f32 0.0, %v1110
      %v1112 = vpop.f32.mrb[0].mxu0
      %v1113 = vadd.f32 0.0, %v1112
      %1114 = vdwg.mxu0
      %1115 = vmatprep.subr.mxu0 0.0
      %1116 = vmatpush1.msra.mxu0 %v1042
      %1117 = vmatprep.subr.mxu0 0.0
      %1118 = vmatpush1.msra.mxu0 0.0
      %1119 = vmatprep.subr.mxu0 0.0
      %1120 = vmatpush1.msra.mxu0 0.0
      %1121 = vmatprep.subr.mxu0 0.0
      %1122 = vmatpush1.msra.mxu0 0.0
      %1123 = vmatprep.subr.mxu0 0.0
      %1124 = vmatpush1.msra.mxu0 0.0
      %1125 = vmatprep.subr.mxu0 0.0
      %1126 = vmatpush1.msra.mxu0 0.0
      %1127 = vmatprep.subr.mxu0 0.0
      %1128 = vmatpush1.msra.mxu0 0.0
      %1129 = vmatprep.subr.mxu0 0.0
      %1130 = vmatpush1.msra.mxu0 0.0
      %1131 = vmatprep.subr.mxu0 0.0
      %1132 = vmatpush1.msra.mxu0 0.0
      %1133 = vmatprep.subr.mxu0 0.0
      %1134 = vmatpush1.msra.mxu0 0.0
      %1135 = vmatprep.subr.mxu0 0.0
      %1136 = vmatpush1.msra.mxu0 0.0
      %1137 = vmatprep.subr.mxu0 0.0
      %1138 = vmatpush1.msra.mxu0 0.0
      %1139 = vmatprep.subr.mxu0 0.0
      %1140 = vmatpush1.msra.mxu0 0.0
      %1141 = vmatprep.subr.mxu0 0.0
      %1142 = vmatpush1.msra.mxu0 0.0
      %1143 = vmatprep.subr.mxu0 0.0
      %1144 = vmatpush1.msra.mxu0 0.0
      %1145 = vmatprep.subr.mxu0 0.0
      %1146 = vmatpush1.msra.mxu0 0.0
      %1147 = vmatprep.subr.mxu0 0.0
      %1148 = vmatpush1.msra.mxu0 0.0
      %1149 = vmatprep.subr.mxu0 0.0
      %1150 = vmatpush1.msra.mxu0 0.0
      %1151 = vmatprep.subr.mxu0 0.0
      %1152 = vmatpush1.msra.mxu0 0.0
      %1153 = vmatprep.subr.mxu0 0.0
      %1154 = vmatpush1.msra.mxu0 0.0
      %1155 = vmatprep.subr.mxu0 0.0
      %1156 = vmatpush1.msra.mxu0 0.0
      %1157 = vmatprep.subr.mxu0 0.0
      %1158 = vmatpush1.msra.mxu0 0.0
      %1159 = vmatprep.subr.mxu0 0.0
      %1160 = vmatpush1.msra.mxu0 0.0
      %1161 = vmatprep.subr.mxu0 0.0
      %1162 = vmatpush1.msra.mxu0 0.0
      %1163 = vmatprep.subr.mxu0 0.0
      %1164 = vmatpush1.msra.mxu0 0.0
      %1165 = vmatprep.subr.mxu0 0.0
      %1166 = vmatpush1.msra.mxu0 0.0
      %1167 = vmatprep.subr.mxu0 0.0
      %1168 = vmatpush1.msra.mxu0 0.0
      %1169 = vmatprep.subr.mxu0 0.0
      %1170 = vmatpush1.msra.mxu0 0.0
      %1171 = vmatprep.subr.mxu0 0.0
      %1172 = vmatpush1.msra.mxu0 0.0
      %1173 = vmatprep.subr.mxu0 0.0
      %1174 = vmatpush1.msra.mxu0 0.0
      %1175 = vmatprep.subr.mxu0 0.0
      %1176 = vmatpush1.msra.mxu0 0.0
      %1177 = vmatprep.subr.mxu0 0.0
      %1178 = vmatpush1.msra.mxu0 0.0
      %1179 = vmatprep.mubr.f32.mxu0 0.0
      %1180 = vmatmul.mubr.f32.gmra.mrb[0].mxu0 %v1036
      %v1181 = vpop.f32.mrb[0].mxu0
      %v1182 = vadd.f32 0.0, %v1181
      %v1183 = vpop.f32.mrb[0].mxu0
      %1184 = vdwg.mxu0
      %v1185 = vadd.f32 %v1012, %v1111
      %v1186 = vadd.f32 %v1013, %v1113
      %v1187 = vadd.f32 %v1014, %v1182
      %v1188 = vld [vmem:[%s165] sm:$0xff]
      %v1189 = vld [vmem:[%s165 + $0x8] sm:$0xff]
      %s1190 = scalar_lea.vmem %s1, 48
      %v1191 = vld [vmem:[%s1190] sm:$0xff]
      %v1194 = vcombine.high %v1188, %v1188
      %v1195 = vcombine.high %v1189, %v1189
      %1196 = vrot.lane.b32.xlu0 %v1188, 92
      %v1197 = vpop.permute.xlu0 %1196
      %1198 = vrot.lane.b32.xlu0 %v1194, 92
      %v1199 = vpop.permute.xlu0 %1198
      %1200 = vrot.lane.b32.xlu0 %v1189, 92
      %v1201 = vpop.permute.xlu0 %1200
      %1202 = vrot.lane.b32.xlu0 %v1195, 92
      %v1203 = vpop.permute.xlu0 %1202
      %vm1204 = vcmask 752640
      %v1205 = vsel %vm1204, %v1197, %v1199
      %v1206 = vsel %vm1204, %v1199, %v1201
      %v1207 = vsel %vm1204, %v1201, %v1203
      %v1209 = vsel %vm193, %v1191, 0
      %v1211 = vsel %vm197, %v1205, 0
      %v1213 = vsel %vm197, %v1206, 0
      %v1215 = vsel %vm197, %v1207, 0
      %1217 = vmatprep.subr.mxu0 %v1213
      %1218 = vmatpush1.msra.mxu0 %v1211
      %1219 = vmatprep.subr.mxu0 0.0
      %1220 = vmatpush1.msra.mxu0 0.0
      %1221 = vmatprep.subr.mxu0 0.0
      %1222 = vmatpush1.msra.mxu0 0.0
      %1223 = vmatprep.subr.mxu0 0.0
      %1224 = vmatpush1.msra.mxu0 0.0
      %1225 = vmatprep.subr.mxu0 0.0
      %1226 = vmatpush1.msra.mxu0 0.0
      %1227 = vmatprep.subr.mxu0 0.0
      %1228 = vmatpush1.msra.mxu0 0.0
      %1229 = vmatprep.subr.mxu0 0.0
      %1230 = vmatpush1.msra.mxu0 0.0
      %1231 = vmatprep.subr.mxu0 0.0
      %1232 = vmatpush1.msra.mxu0 0.0
      %1233 = vmatprep.subr.mxu0 0.0
      %1234 = vmatpush1.msra.mxu0 0.0
      %1235 = vmatprep.subr.mxu0 0.0
      %1236 = vmatpush1.msra.mxu0 0.0
      %1237 = vmatprep.subr.mxu0 0.0
      %1238 = vmatpush1.msra.mxu0 0.0
      %1239 = vmatprep.subr.mxu0 0.0
      %1240 = vmatpush1.msra.mxu0 0.0
      %1241 = vmatprep.subr.mxu0 0.0
      %1242 = vmatpush1.msra.mxu0 0.0
      %1243 = vmatprep.subr.mxu0 0.0
      %1244 = vmatpush1.msra.mxu0 0.0
      %1245 = vmatprep.subr.mxu0 0.0
      %1246 = vmatpush1.msra.mxu0 0.0
      %1247 = vmatprep.subr.mxu0 0.0
      %1248 = vmatpush1.msra.mxu0 0.0
      %1249 = vmatprep.subr.mxu0 0.0
      %1250 = vmatpush1.msra.mxu0 0.0
      %1251 = vmatprep.subr.mxu0 0.0
      %1252 = vmatpush1.msra.mxu0 0.0
      %1253 = vmatprep.subr.mxu0 0.0
      %1254 = vmatpush1.msra.mxu0 0.0
      %1255 = vmatprep.subr.mxu0 0.0
      %1256 = vmatpush1.msra.mxu0 0.0
      %1257 = vmatprep.subr.mxu0 0.0
      %1258 = vmatpush1.msra.mxu0 0.0
      %1259 = vmatprep.subr.mxu0 0.0
      %1260 = vmatpush1.msra.mxu0 0.0
      %1261 = vmatprep.subr.mxu0 0.0
      %1262 = vmatpush1.msra.mxu0 0.0
      %1263 = vmatprep.subr.mxu0 0.0
      %1264 = vmatpush1.msra.mxu0 0.0
      %1265 = vmatprep.subr.mxu0 0.0
      %1266 = vmatpush1.msra.mxu0 0.0
      %1267 = vmatprep.subr.mxu0 0.0
      %1268 = vmatpush1.msra.mxu0 0.0
      %1269 = vmatprep.subr.mxu0 0.0
      %1270 = vmatpush1.msra.mxu0 0.0
      %1271 = vmatprep.subr.mxu0 0.0
      %1272 = vmatpush1.msra.mxu0 0.0
      %1273 = vmatprep.subr.mxu0 0.0
      %1274 = vmatpush1.msra.mxu0 0.0
      %1275 = vmatprep.subr.mxu0 0.0
      %1276 = vmatpush1.msra.mxu0 0.0
      %1277 = vmatprep.subr.mxu0 0.0
      %1278 = vmatpush1.msra.mxu0 0.0
      %1279 = vmatprep.subr.mxu0 0.0
      %1280 = vmatpush1.msra.mxu0 0.0
      %1281 = vmatprep.mubr.f32.mxu0 0.0
      %1282 = vmatmul.mubr.f32.gmra.mrb[0].mxu0 %v1209
      %v1283 = vpop.f32.mrb[0].mxu0
      %v1284 = vadd.f32 0.0, %v1283
      %v1285 = vpop.f32.mrb[0].mxu0
      %v1286 = vadd.f32 0.0, %v1285
      %1287 = vdwg.mxu0
      %1288 = vmatprep.subr.mxu0 0.0
      %1289 = vmatpush1.msra.mxu0 %v1215
      %1290 = vmatprep.subr.mxu0 0.0
      %1291 = vmatpush1.msra.mxu0 0.0
      %1292 = vmatprep.subr.mxu0 0.0
      %1293 = vmatpush1.msra.mxu0 0.0
      %1294 = vmatprep.subr.mxu0 0.0
      %1295 = vmatpush1.msra.mxu0 0.0
      %1296 = vmatprep.subr.mxu0 0.0
      %1297 = vmatpush1.msra.mxu0 0.0
      %1298 = vmatprep.subr.mxu0 0.0
      %1299 = vmatpush1.msra.mxu0 0.0
      %1300 = vmatprep.subr.mxu0 0.0
      %1301 = vmatpush1.msra.mxu0 0.0
      %1302 = vmatprep.subr.mxu0 0.0
      %1303 = vmatpush1.msra.mxu0 0.0
      %1304 = vmatprep.subr.mxu0 0.0
      %1305 = vmatpush1.msra.mxu0 0.0
      %1306 = vmatprep.subr.mxu0 0.0
      %1307 = vmatpush1.msra.mxu0 0.0
      %1308 = vmatprep.subr.mxu0 0.0
      %1309 = vmatpush1.msra.mxu0 0.0
      %1310 = vmatprep.subr.mxu0 0.0
      %1311 = vmatpush1.msra.mxu0 0.0
      %1312 = vmatprep.subr.mxu0 0.0
      %1313 = vmatpush1.msra.mxu0 0.0
      %1314 = vmatprep.subr.mxu0 0.0
      %1315 = vmatpush1.msra.mxu0 0.0
      %1316 = vmatprep.subr.mxu0 0.0
      %1317 = vmatpush1.msra.mxu0 0.0
      %1318 = vmatprep.subr.mxu0 0.0
      %1319 = vmatpush1.msra.mxu0 0.0
      %1320 = vmatprep.subr.mxu0 0.0
      %1321 = vmatpush1.msra.mxu0 0.0
      %1322 = vmatprep.subr.mxu0 0.0
      %1323 = vmatpush1.msra.mxu0 0.0
      %1324 = vmatprep.subr.mxu0 0.0
      %1325 = vmatpush1.msra.mxu0 0.0
      %1326 = vmatprep.subr.mxu0 0.0
      %1327 = vmatpush1.msra.mxu0 0.0
      %1328 = vmatprep.subr.mxu0 0.0
      %1329 = vmatpush1.msra.mxu0 0.0
      %1330 = vmatprep.subr.mxu0 0.0
      %1331 = vmatpush1.msra.mxu0 0.0
      %1332 = vmatprep.subr.mxu0 0.0
      %1333 = vmatpush1.msra.mxu0 0.0
      %1334 = vmatprep.subr.mxu0 0.0
      %1335 = vmatpush1.msra.mxu0 0.0
      %1336 = vmatprep.subr.mxu0 0.0
      %1337 = vmatpush1.msra.mxu0 0.0
      %1338 = vmatprep.subr.mxu0 0.0
      %1339 = vmatpush1.msra.mxu0 0.0
      %1340 = vmatprep.subr.mxu0 0.0
      %1341 = vmatpush1.msra.mxu0 0.0
      %1342 = vmatprep.subr.mxu0 0.0
      %1343 = vmatpush1.msra.mxu0 0.0
      %1344 = vmatprep.subr.mxu0 0.0
      %1345 = vmatpush1.msra.mxu0 0.0
      %1346 = vmatprep.subr.mxu0 0.0
      %1347 = vmatpush1.msra.mxu0 0.0
      %1348 = vmatprep.subr.mxu0 0.0
      %1349 = vmatpush1.msra.mxu0 0.0
      %1350 = vmatprep.subr.mxu0 0.0
      %1351 = vmatpush1.msra.mxu0 0.0
      %1352 = vmatprep.mubr.f32.mxu0 0.0
      %1353 = vmatmul.mubr.f32.gmra.mrb[0].mxu0 %v1209
      %v1354 = vpop.f32.mrb[0].mxu0
      %v1355 = vadd.f32 0.0, %v1354
      %v1356 = vpop.f32.mrb[0].mxu0
      %1357 = vdwg.mxu0
      %v1358 = vadd.f32 %v1185, %v1284
      %v1359 = vadd.f32 %v1186, %v1286
      %v1360 = vadd.f32 %v1187, %v1355
      %v1361 = vld [vmem:[%s165] sm:$0xff]
      %v1362 = vld [vmem:[%s165 + $0x8] sm:$0xff]
      %s1363 = scalar_lea.vmem %s1, 56
      %v1364 = vld [vmem:[%s1363] sm:$0xff]
      %v1367 = vcombine.high %v1361, %v1361
      %v1368 = vcombine.high %v1362, %v1362
      %1369 = vrot.lane.b32.xlu0 %v1361, 91
      %v1370 = vpop.permute.xlu0 %1369
      %1371 = vrot.lane.b32.xlu0 %v1367, 91
      %v1372 = vpop.permute.xlu0 %1371
      %1373 = vrot.lane.b32.xlu0 %v1362, 91
      %v1374 = vpop.permute.xlu0 %1373
      %1375 = vrot.lane.b32.xlu0 %v1368, 91
      %v1376 = vpop.permute.xlu0 %1375
      %vm1377 = vcmask 744448
      %v1378 = vsel %vm1377, %v1370, %v1372
      %v1379 = vsel %vm1377, %v1372, %v1374
      %v1380 = vsel %vm1377, %v1374, %v1376
      %v1382 = vsel %vm193, %v1364, 0
      %v1384 = vsel %vm197, %v1378, 0
      %v1386 = vsel %vm197, %v1379, 0
      %v1388 = vsel %vm197, %v1380, 0
      %1390 = vmatprep.subr.mxu0 %v1386
      %1391 = vmatpush1.msra.mxu0 %v1384
      %1392 = vmatprep.subr.mxu0 0.0
      %1393 = vmatpush1.msra.mxu0 0.0
      %1394 = vmatprep.subr.mxu0 0.0
      %1395 = vmatpush1.msra.mxu0 0.0
      %1396 = vmatprep.subr.mxu0 0.0
      %1397 = vmatpush1.msra.mxu0 0.0
      %1398 = vmatprep.subr.mxu0 0.0
      %1399 = vmatpush1.msra.mxu0 0.0
      %1400 = vmatprep.subr.mxu0 0.0
      %1401 = vmatpush1.msra.mxu0 0.0
      %1402 = vmatprep.subr.mxu0 0.0
      %1403 = vmatpush1.msra.mxu0 0.0
      %1404 = vmatprep.subr.mxu0 0.0
      %1405 = vmatpush1.msra.mxu0 0.0
      %1406 = vmatprep.subr.mxu0 0.0
      %1407 = vmatpush1.msra.mxu0 0.0
      %1408 = vmatprep.subr.mxu0 0.0
      %1409 = vmatpush1.msra.mxu0 0.0
      %1410 = vmatprep.subr.mxu0 0.0
      %1411 = vmatpush1.msra.mxu0 0.0
      %1412 = vmatprep.subr.mxu0 0.0
      %1413 = vmatpush1.msra.mxu0 0.0
      %1414 = vmatprep.subr.mxu0 0.0
      %1415 = vmatpush1.msra.mxu0 0.0
      %1416 = vmatprep.subr.mxu0 0.0
      %1417 = vmatpush1.msra.mxu0 0.0
      %1418 = vmatprep.subr.mxu0 0.0
      %1419 = vmatpush1.msra.mxu0 0.0
      %1420 = vmatprep.subr.mxu0 0.0
      %1421 = vmatpush1.msra.mxu0 0.0
      %1422 = vmatprep.subr.mxu0 0.0
      %1423 = vmatpush1.msra.mxu0 0.0
      %1424 = vmatprep.subr.mxu0 0.0
      %1425 = vmatpush1.msra.mxu0 0.0
      %1426 = vmatprep.subr.mxu0 0.0
      %1427 = vmatpush1.msra.mxu0 0.0
      %1428 = vmatprep.subr.mxu0 0.0
      %1429 = vmatpush1.msra.mxu0 0.0
      %1430 = vmatprep.subr.mxu0 0.0
      %1431 = vmatpush1.msra.mxu0 0.0
      %1432 = vmatprep.subr.mxu0 0.0
      %1433 = vmatpush1.msra.mxu0 0.0
      %1434 = vmatprep.subr.mxu0 0.0
      %1435 = vmatpush1.msra.mxu0 0.0
      %1436 = vmatprep.subr.mxu0 0.0
      %1437 = vmatpush1.msra.mxu0 0.0
      %1438 = vmatprep.subr.mxu0 0.0
      %1439 = vmatpush1.msra.mxu0 0.0
      %1440 = vmatprep.subr.mxu0 0.0
      %1441 = vmatpush1.msra.mxu0 0.0
      %1442 = vmatprep.subr.mxu0 0.0
      %1443 = vmatpush1.msra.mxu0 0.0
      %1444 = vmatprep.subr.mxu0 0.0
      %1445 = vmatpush1.msra.mxu0 0.0
      %1446 = vmatprep.subr.mxu0 0.0
      %1447 = vmatpush1.msra.mxu0 0.0
      %1448 = vmatprep.subr.mxu0 0.0
      %1449 = vmatpush1.msra.mxu0 0.0
      %1450 = vmatprep.subr.mxu0 0.0
      %1451 = vmatpush1.msra.mxu0 0.0
      %1452 = vmatprep.subr.mxu0 0.0
      %1453 = vmatpush1.msra.mxu0 0.0
      %1454 = vmatprep.mubr.f32.mxu0 0.0
      %1455 = vmatmul.mubr.f32.gmra.mrb[0].mxu0 %v1382
      %v1456 = vpop.f32.mrb[0].mxu0
      %v1457 = vadd.f32 0.0, %v1456
      %v1458 = vpop.f32.mrb[0].mxu0
      %v1459 = vadd.f32 0.0, %v1458
      %1460 = vdwg.mxu0
      %1461 = vmatprep.subr.mxu0 0.0
      %1462 = vmatpush1.msra.mxu0 %v1388
      %1463 = vmatprep.subr.mxu0 0.0
      %1464 = vmatpush1.msra.mxu0 0.0
      %1465 = vmatprep.subr.mxu0 0.0
      %1466 = vmatpush1.msra.mxu0 0.0
      %1467 = vmatprep.subr.mxu0 0.0
      %1468 = vmatpush1.msra.mxu0 0.0
      %1469 = vmatprep.subr.mxu0 0.0
      %1470 = vmatpush1.msra.mxu0 0.0
      %1471 = vmatprep.subr.mxu0 0.0
      %1472 = vmatpush1.msra.mxu0 0.0
      %1473 = vmatprep.subr.mxu0 0.0
      %1474 = vmatpush1.msra.mxu0 0.0
      %1475 = vmatprep.subr.mxu0 0.0
      %1476 = vmatpush1.msra.mxu0 0.0
      %1477 = vmatprep.subr.mxu0 0.0
      %1478 = vmatpush1.msra.mxu0 0.0
      %1479 = vmatprep.subr.mxu0 0.0
      %1480 = vmatpush1.msra.mxu0 0.0
      %1481 = vmatprep.subr.mxu0 0.0
      %1482 = vmatpush1.msra.mxu0 0.0
      %1483 = vmatprep.subr.mxu0 0.0
      %1484 = vmatpush1.msra.mxu0 0.0
      %1485 = vmatprep.subr.mxu0 0.0
      %1486 = vmatpush1.msra.mxu0 0.0
      %1487 = vmatprep.subr.mxu0 0.0
      %1488 = vmatpush1.msra.mxu0 0.0
      %1489 = vmatprep.subr.mxu0 0.0
      %1490 = vmatpush1.msra.mxu0 0.0
      %1491 = vmatprep.subr.mxu0 0.0
      %1492 = vmatpush1.msra.mxu0 0.0
      %1493 = vmatprep.subr.mxu0 0.0
      %1494 = vmatpush1.msra.mxu0 0.0
      %1495 = vmatprep.subr.mxu0 0.0
      %1496 = vmatpush1.msra.mxu0 0.0
      %1497 = vmatprep.subr.mxu0 0.0
      %1498 = vmatpush1.msra.mxu0 0.0
      %1499 = vmatprep.subr.mxu0 0.0
      %1500 = vmatpush1.msra.mxu0 0.0
      %1501 = vmatprep.subr.mxu0 0.0
      %1502 = vmatpush1.msra.mxu0 0.0
      %1503 = vmatprep.subr.mxu0 0.0
      %1504 = vmatpush1.msra.mxu0 0.0
      %1505 = vmatprep.subr.mxu0 0.0
      %1506 = vmatpush1.msra.mxu0 0.0
      %1507 = vmatprep.subr.mxu0 0.0
      %1508 = vmatpush1.msra.mxu0 0.0
      %1509 = vmatprep.subr.mxu0 0.0
      %1510 = vmatpush1.msra.mxu0 0.0
      %1511 = vmatprep.subr.mxu0 0.0
      %1512 = vmatpush1.msra.mxu0 0.0
      %1513 = vmatprep.subr.mxu0 0.0
      %1514 = vmatpush1.msra.mxu0 0.0
      %1515 = vmatprep.subr.mxu0 0.0
      %1516 = vmatpush1.msra.mxu0 0.0
      %1517 = vmatprep.subr.mxu0 0.0
      %1518 = vmatpush1.msra.mxu0 0.0
      %1519 = vmatprep.subr.mxu0 0.0
      %1520 = vmatpush1.msra.mxu0 0.0
      %1521 = vmatprep.subr.mxu0 0.0
      %1522 = vmatpush1.msra.mxu0 0.0
      %1523 = vmatprep.subr.mxu0 0.0
      %1524 = vmatpush1.msra.mxu0 0.0
      %1525 = vmatprep.mubr.f32.mxu0 0.0
      %1526 = vmatmul.mubr.f32.gmra.mrb[0].mxu0 %v1382
      %v1527 = vpop.f32.mrb[0].mxu0
      %v1528 = vadd.f32 0.0, %v1527
      %v1529 = vpop.f32.mrb[0].mxu0
      %1530 = vdwg.mxu0
      %v1531 = vadd.f32 %v1358, %v1457
      %v1532 = vadd.f32 %v1359, %v1459
      %v1533 = vadd.f32 %v1360, %v1528
      %v1534 = vld [vmem:[%s165] sm:$0xff]
      %v1535 = vld [vmem:[%s165 + $0x8] sm:$0xff]
      %s1536 = scalar_lea.vmem %s1, 64
      %v1537 = vld [vmem:[%s1536] sm:$0xff]
      %v1540 = vcombine.high %v1534, %v1534
      %v1541 = vcombine.high %v1535, %v1535
      %1542 = vrot.lane.b32.xlu0 %v1534, 90
      %v1543 = vpop.permute.xlu0 %1542
      %1544 = vrot.lane.b32.xlu0 %v1540, 90
      %v1545 = vpop.permute.xlu0 %1544
      %1546 = vrot.lane.b32.xlu0 %v1535, 90
      %v1547 = vpop.permute.xlu0 %1546
      %1548 = vrot.lane.b32.xlu0 %v1541, 90
      %v1549 = vpop.permute.xlu0 %1548
      %vm1550 = vcmask 736256
      %v1551 = vsel %vm1550, %v1543, %v1545
      %v1552 = vsel %vm1550, %v1545, %v1547
      %v1553 = vsel %vm1550, %v1547, %v1549
      %v1555 = vsel %vm193, %v1537, 0
      %v1557 = vsel %vm197, %v1551, 0
      %v1559 = vsel %vm197, %v1552, 0
      %v1561 = vsel %vm197, %v1553, 0
      %1563 = vmatprep.subr.mxu0 %v1559
      %1564 = vmatpush1.msra.mxu0 %v1557
      %1565 = vmatprep.subr.mxu0 0.0
      %1566 = vmatpush1.msra.mxu0 0.0
      %1567 = vmatprep.subr.mxu0 0.0
      %1568 = vmatpush1.msra.mxu0 0.0
      %1569 = vmatprep.subr.mxu0 0.0
      %1570 = vmatpush1.msra.mxu0 0.0
      %1571 = vmatprep.subr.mxu0 0.0
      %1572 = vmatpush1.msra.mxu0 0.0
      %1573 = vmatprep.subr.mxu0 0.0
      %1574 = vmatpush1.msra.mxu0 0.0
      %1575 = vmatprep.subr.mxu0 0.0
      %1576 = vmatpush1.msra.mxu0 0.0
      %1577 = vmatprep.subr.mxu0 0.0
      %1578 = vmatpush1.msra.mxu0 0.0
      %1579 = vmatprep.subr.mxu0 0.0
      %1580 = vmatpush1.msra.mxu0 0.0
      %1581 = vmatprep.subr.mxu0 0.0
      %1582 = vmatpush1.msra.mxu0 0.0
      %1583 = vmatprep.subr.mxu0 0.0
      %1584 = vmatpush1.msra.mxu0 0.0
      %1585 = vmatprep.subr.mxu0 0.0
      %1586 = vmatpush1.msra.mxu0 0.0
      %1587 = vmatprep.subr.mxu0 0.0
      %1588 = vmatpush1.msra.mxu0 0.0
      %1589 = vmatprep.subr.mxu0 0.0
      %1590 = vmatpush1.msra.mxu0 0.0
      %1591 = vmatprep.subr.mxu0 0.0
      %1592 = vmatpush1.msra.mxu0 0.0
      %1593 = vmatprep.subr.mxu0 0.0
      %1594 = vmatpush1.msra.mxu0 0.0
      %1595 = vmatprep.subr.mxu0 0.0
      %1596 = vmatpush1.msra.mxu0 0.0
      %1597 = vmatprep.subr.mxu0 0.0
      %1598 = vmatpush1.msra.mxu0 0.0
      %1599 = vmatprep.subr.mxu0 0.0
      %1600 = vmatpush1.msra.mxu0 0.0
      %1601 = vmatprep.subr.mxu0 0.0
      %1602 = vmatpush1.msra.mxu0 0.0
      %1603 = vmatprep.subr.mxu0 0.0
      %1604 = vmatpush1.msra.mxu0 0.0
      %1605 = vmatprep.subr.mxu0 0.0
      %1606 = vmatpush1.msra.mxu0 0.0
      %1607 = vmatprep.subr.mxu0 0.0
      %1608 = vmatpush1.msra.mxu0 0.0
      %1609 = vmatprep.subr.mxu0 0.0
      %1610 = vmatpush1.msra.mxu0 0.0
      %1611 = vmatprep.subr.mxu0 0.0
      %1612 = vmatpush1.msra.mxu0 0.0
      %1613 = vmatprep.subr.mxu0 0.0
      %1614 = vmatpush1.msra.mxu0 0.0
      %1615 = vmatprep.subr.mxu0 0.0
      %1616 = vmatpush1.msra.mxu0 0.0
      %1617 = vmatprep.subr.mxu0 0.0
      %1618 = vmatpush1.msra.mxu0 0.0
      %1619 = vmatprep.subr.mxu0 0.0
      %1620 = vmatpush1.msra.mxu0 0.0
      %1621 = vmatprep.subr.mxu0 0.0
      %1622 = vmatpush1.msra.mxu0 0.0
      %1623 = vmatprep.subr.mxu0 0.0
      %1624 = vmatpush1.msra.mxu0 0.0
      %1625 = vmatprep.subr.mxu0 0.0
      %1626 = vmatpush1.msra.mxu0 0.0
      %1627 = vmatprep.mubr.f32.mxu0 0.0
      %1628 = vmatmul.mubr.f32.gmra.mrb[0].mxu0 %v1555
      %v1629 = vpop.f32.mrb[0].mxu0
      %v1630 = vadd.f32 0.0, %v1629
      %v1631 = vpop.f32.mrb[0].mxu0
      %v1632 = vadd.f32 0.0, %v1631
      %1633 = vdwg.mxu0
      %1634 = vmatprep.subr.mxu0 0.0
      %1635 = vmatpush1.msra.mxu0 %v1561
      %1636 = vmatprep.subr.mxu0 0.0
      %1637 = vmatpush1.msra.mxu0 0.0
      %1638 = vmatprep.subr.mxu0 0.0
      %1639 = vmatpush1.msra.mxu0 0.0
      %1640 = vmatprep.subr.mxu0 0.0
      %1641 = vmatpush1.msra.mxu0 0.0
      %1642 = vmatprep.subr.mxu0 0.0
      %1643 = vmatpush1.msra.mxu0 0.0
      %1644 = vmatprep.subr.mxu0 0.0
      %1645 = vmatpush1.msra.mxu0 0.0
      %1646 = vmatprep.subr.mxu0 0.0
      %1647 = vmatpush1.msra.mxu0 0.0
      %1648 = vmatprep.subr.mxu0 0.0
      %1649 = vmatpush1.msra.mxu0 0.0
      %1650 = vmatprep.subr.mxu0 0.0
      %1651 = vmatpush1.msra.mxu0 0.0
      %1652 = vmatprep.subr.mxu0 0.0
      %1653 = vmatpush1.msra.mxu0 0.0
      %1654 = vmatprep.subr.mxu0 0.0
      %1655 = vmatpush1.msra.mxu0 0.0
      %1656 = vmatprep.subr.mxu0 0.0
      %1657 = vmatpush1.msra.mxu0 0.0
      %1658 = vmatprep.subr.mxu0 0.0
      %1659 = vmatpush1.msra.mxu0 0.0
      %1660 = vmatprep.subr.mxu0 0.0
      %1661 = vmatpush1.msra.mxu0 0.0
      %1662 = vmatprep.subr.mxu0 0.0
      %1663 = vmatpush1.msra.mxu0 0.0
      %1664 = vmatprep.subr.mxu0 0.0
      %1665 = vmatpush1.msra.mxu0 0.0
      %1666 = vmatprep.subr.mxu0 0.0
      %1667 = vmatpush1.msra.mxu0 0.0
      %1668 = vmatprep.subr.mxu0 0.0
      %1669 = vmatpush1.msra.mxu0 0.0
      %1670 = vmatprep.subr.mxu0 0.0
      %1671 = vmatpush1.msra.mxu0 0.0
      %1672 = vmatprep.subr.mxu0 0.0
      %1673 = vmatpush1.msra.mxu0 0.0
      %1674 = vmatprep.subr.mxu0 0.0
      %1675 = vmatpush1.msra.mxu0 0.0
      %1676 = vmatprep.subr.mxu0 0.0
      %1677 = vmatpush1.msra.mxu0 0.0
      %1678 = vmatprep.subr.mxu0 0.0
      %1679 = vmatpush1.msra.mxu0 0.0
      %1680 = vmatprep.subr.mxu0 0.0
      %1681 = vmatpush1.msra.mxu0 0.0
      %1682 = vmatprep.subr.mxu0 0.0
      %1683 = vmatpush1.msra.mxu0 0.0
      %1684 = vmatprep.subr.mxu0 0.0
      %1685 = vmatpush1.msra.mxu0 0.0
      %1686 = vmatprep.subr.mxu0 0.0
      %1687 = vmatpush1.msra.mxu0 0.0
      %1688 = vmatprep.subr.mxu0 0.0
      %1689 = vmatpush1.msra.mxu0 0.0
      %1690 = vmatprep.subr.mxu0 0.0
      %1691 = vmatpush1.msra.mxu0 0.0
      %1692 = vmatprep.subr.mxu0 0.0
      %1693 = vmatpush1.msra.mxu0 0.0
      %1694 = vmatprep.subr.mxu0 0.0
      %1695 = vmatpush1.msra.mxu0 0.0
      %1696 = vmatprep.subr.mxu0 0.0
      %1697 = vmatpush1.msra.mxu0 0.0
      %1698 = vmatprep.mubr.f32.mxu0 0.0
      %1699 = vmatmul.mubr.f32.gmra.mrb[0].mxu0 %v1555
      %v1700 = vpop.f32.mrb[0].mxu0
      %v1701 = vadd.f32 0.0, %v1700
      %v1702 = vpop.f32.mrb[0].mxu0
      %1703 = vdwg.mxu0
      %v1704 = vadd.f32 %v1531, %v1630
      %v1705 = vadd.f32 %v1532, %v1632
      %v1706 = vadd.f32 %v1533, %v1701
      %v1707 = vld [vmem:[%s2] sm:$0xff]
      %1709 = vset.pattern.permute.xlu0 0
      %1710 = vperm.xlu0 %1709, %v1707
      %v1711 = vpop.permute.xlu0 %1710
      %v1713 = vadd.f32 %v1704, %v1711
      %v1714 = vadd.f32 %v1705, %v1711
      %v1715 = vadd.f32 %v1706, %v1711
      %vm1716 = vcmp.gt.f32.partialorder %v1713, 0.0
      %vm1717 = vcmp.gt.f32.partialorder %v1714, 0.0
      %vm1718 = vcmp.gt.f32.partialorder %v1715, 0.0
      %v1719 = vmul.f32 %v1713, 0.1
      %v1720 = vmul.f32 %v1714, 0.1
      %v1721 = vmul.f32 %v1715, 0.1
      %v1722 = vsel %vm1716, %v1713, %v1719
      %v1723 = vsel %vm1717, %v1714, %v1720
      %v1724 = vsel %vm1718, %v1715, %v1721
      %1725 = vst [vmem:[%s170] sm:$0xff] %v1722
      %1726 = vst [vmem:[%s170 + $0x8] sm:$0xff] %v1723
      %1727 = vst [vmem:[%s170 + $0x10] sm:$0xff] %v1724
      %p1728 = scmp.lt.s32.totalorder %s14, 1
      %s1729 = scalar_select %p1728, %s14, 1
      %s1730 = smul.addr %s1729, 3
      %s1731 = smul.addr %s1730, 8
      %s1732 = scalar_lea.vmem %s3, %s1731
      // Predicated region
      $region33: #{conv_block_forward.1} parent=31 // pred_check
        %p1733 = pneg %p100
      $region34: #{conv_block_forward.1} parent=31 // pred_check_branch
        %1735 = sbr.rel (%p1733) target = $region36
      $region35: #{conv_block_forward.1} parent=31 // pred_region
        _
      $region36: #{conv_block_forward.1} parent=31 // pred_fallthru
        _
    $region32: #{conv_block_forward.1} parent=5 // pred_fallthru
      _
    %p1736 = scmp.le.s32.totalorder 2, %s9
    // Predicated region
    $region37: #{conv_block_forward.1} parent=5 // pred_check
      %p1737 = pneg %p1736
    $region38: #{conv_block_forward.1} parent=5 // pred_check_branch
      %1739 = sbr.rel (%p1737) target = $region40
    $region39: #{conv_block_forward.1} parent=5 // pred_region
      %s1740 = ssub.s32 %s9, 2
      // Predicated region
      $region41: #{conv_block_forward.1} parent=39 // pred_check
        %p1741 = pneg %p106
      $region42: #{conv_block_forward.1} parent=39 // pred_check_branch
        %1743 = sbr.rel (%p1741) target = $region44
      $region43: #{conv_block_forward.1} parent=39 // pred_region
        %p1744 = scmp.lt.s32.totalorder %s15, 1
        %s1745 = scalar_select %p1744, %s15, 1
        %s1746 = smul.addr %s1745, 3
        %s1747 = smul.addr %s1746, 8
        %s1748 = scalar_lea.vmem %s3, %s1747
      $region44: #{conv_block_forward.1} parent=39 // pred_fallthru
        _
    $region40: #{conv_block_forward.1} parent=5 // pred_fallthru
      _
  $region6: #{conv_block_forward.1} parent=0 // loop_footer
    %s13 = sadd.s32 1, %s9
  $region7: #{conv_block_forward.1} parent=0 // loop_footer_branch
    %8 = sbr.rel target = $region3
  $region8: #{conv_block_forward.1} parent=0 // loop_exit
    _

</llo_original>
